<compile_context>
chip_gen: v7x
topology: tpu7x:2x2x1
jax: 0.10.0
libtpu: 0.0.40
codegen_flags: <defaults>
</compile_context>

<pallas_src>
import numpy as np
import jax
import jax.numpy as jnp
from jax import lax
from jax.experimental import pallas as pl
from jax.experimental.pallas import tpu as pltpu


def decoder_binary_rnn_kernel(x_ref, w_img_ref, b_img_ref, w_hh_ref,
                              b_gates_ref, w_fin_ref, b_fin_ref, out_ref):
    """One batch block per grid point; everything resident in VMEM.

    x_ref:       (bb, C)   cnn_features block
    w_img_ref:   (C, H)    linear_img_to_lstm.weight.T
    b_img_ref:   (1, H)    linear_img_to_lstm.bias
    w_hh_ref:    (H, 4H)   lstm.weight_hh_l0.T, gate columns reordered [i|f|o|g]
    b_gates_ref: (1, 4H)   lstm.bias_ih_l0 + bias_hh_l0, same reorder
    w_fin_ref:   (H, 1)    linear_final.weight.T
    b_fin_ref:   (1, 1)    linear_final.bias
    out_ref:     (bb, L)   per-step outputs, batch-major
    """
    H = w_hh_ref.shape[0]
    bb, L = out_ref.shape

    # Hoist loop-invariant loads once (JAX does not CSE broadcasts/loads across
    # an unrolled loop).
    w_hh = w_hh_ref[...]
    b_gates = b_gates_ref[...]
    w_fin = w_fin_ref[...]
    b_fin = b_fin_ref[...]

    # h0 = linear_img_to_lstm(cnn_features); c0 = 0.
    h = (jnp.dot(x_ref[...], w_img_ref[...],
                 preferred_element_type=jnp.float32) + b_img_ref[...])
    c = jnp.zeros_like(h)

    # LSTM input is identically zero, so only the recurrent projection and the
    # summed biases contribute to the gates.  L is static -> fully unroll the
    # serial recurrence.
    hs = []
    for _ in range(L):
        gates = jnp.dot(h, w_hh, preferred_element_type=jnp.float32) + b_gates
        sig = jax.nn.sigmoid(gates[:, :3 * H])       # i | f | o in one EUP pass
        g = jnp.tanh(gates[:, 3 * H:])
        c = sig[:, H:2 * H] * c + sig[:, :H] * g     # f*c + i*g
        h = sig[:, 2 * H:3 * H] * jnp.tanh(c)        # o*tanh(c)
        hs.append(h)

    # linear_final applied to every saved hidden state AFTER the recurrence
    # (off the serial chain): small MXU dots instead of per-step VPU-mul +
    # XLU lane-reduce, and exactly ONE store of the full (bb, L) tile instead
    # of L masked partial stores inside the loop.  The (bb, L) tile is
    # assembled with lane-iota selects (no in-kernel reshape/concat needed).
    col = lax.broadcasted_iota(jnp.int32, (bb, L), 1)
    out = jnp.zeros((bb, L), jnp.float32)
    for t, h_t in enumerate(hs):
        y_t = jnp.dot(h_t, w_fin, preferred_element_type=jnp.float32)  # (bb, 1)
        out = jnp.where(col == t, y_t, out)
    out_ref[...] = out + b_fin


def prepare_params(params):
    """One-time parameter re-layout — keep this OFF the per-call hot path."""
    H = params["w_img"].shape[0]
    f32 = jnp.float32

    # (H, 4H) with PyTorch gate column order [i|f|g|o] -> reorder to [i|f|o|g]
    # so the kernel applies one sigmoid over the first 3H columns and one tanh
    # over the last H.
    w_hh_t = jnp.transpose(params["w_hh"]).astype(f32)
    w_hh_r = jnp.concatenate(
        [w_hh_t[:, :2 * H], w_hh_t[:, 3 * H:], w_hh_t[:, 2 * H:3 * H]], axis=1)
    b_g = (params["b_ih"] + params["b_hh"]).astype(f32)
    b_gates = jnp.concatenate(
        [b_g[:2 * H], b_g[3 * H:], b_g[2 * H:3 * H]]).reshape(1, 4 * H)

    return {
        "w_img_t": jnp.transpose(params["w_img"]).astype(f32),   # (C, H)
        "b_img": params["b_img"].astype(f32).reshape(1, H),      # (1, H)
        "w_hh_t": w_hh_r,                                        # (H, 4H)
        "b_gates": b_gates,                                      # (1, 4H)
        "w_fin_t": params["w_fin"].astype(f32).reshape(H, 1),    # (H, 1)
        "b_fin": params["b_fin"].astype(f32).reshape(1, 1),      # (1, 1)
    }


def _pick_block_b(batch):
    # Split the batch across grid points (sharded over v7x's two TensorCores
    # via "parallel" dimension semantics) once it is big enough to matter;
    # partial blocks must keep the sublane dim a multiple of 8.
    if batch % 16 == 0:
        return batch // 2
    return batch


def decoder_binary_rnn(cnn_features, prepped, num_labels):
    """Wrapper: pallas_call with a (possibly trivial) parallel batch grid."""
    x = cnn_features.astype(jnp.float32)
    B, C = x.shape
    H = prepped["w_img_t"].shape[1]
    L = int(num_labels)

    block_b = _pick_block_b(B)
    grid = (B // block_b,)
    rep = lambda b: (0, 0)   # replicated weights / biases

    out_bl = pl.pallas_call(
        decoder_binary_rnn_kernel,
        out_shape=jax.ShapeDtypeStruct((B, L), jnp.float32),
        grid=grid,
        in_specs=[
            pl.BlockSpec((block_b, C), lambda b: (b, 0)),   # cnn_features
            pl.BlockSpec((C, H), rep),                      # w_img^T
            pl.BlockSpec((1, H), rep),                      # b_img
            pl.BlockSpec((H, 4 * H), rep),                  # w_hh^T (reordered)
            pl.BlockSpec((1, 4 * H), rep),                  # b_ih + b_hh (reordered)
            pl.BlockSpec((H, 1), rep),                      # w_fin^T
            pl.BlockSpec((1, 1), rep),                      # b_fin
        ],
        out_specs=pl.BlockSpec((block_b, L), lambda b: (b, 0)),
        compiler_params=pltpu.CompilerParams(
            dimension_semantics=("parallel",)),
    )(x, prepped["w_img_t"], prepped["b_img"], prepped["w_hh_t"],
      prepped["b_gates"], prepped["w_fin_t"], prepped["b_fin"])

    # (B, L) -> (B, L, 1), matching PyTorch's stacked (batch_first) output.
    return out_bl[:, :, None]


def reference(cnn_features, params, num_labels):
    """Pure-JAX reference of the PyTorch forward pass (original layouts)."""
    H = params["w_img"].shape[0]
    h = cnn_features @ params["w_img"].T + params["b_img"]
    c = jnp.zeros_like(h)
    b_g = params["b_ih"] + params["b_hh"]
    outs = []
    for _ in range(num_labels):
        gates = h @ params["w_hh"].T + b_g
        i = jax.nn.sigmoid(gates[:, :H])
        f = jax.nn.sigmoid(gates[:, H:2 * H])
        g = jnp.tanh(gates[:, 2 * H:3 * H])
        o = jax.nn.sigmoid(gates[:, 3 * H:])
        c = f * c + i * g
        h = o * jnp.tanh(c)
        outs.append(h @ params["w_fin"].T + params["b_fin"])
    return jnp.stack(outs, axis=1)   # (B, L, 1)


if __name__ == "__main__":
    # Small shapes implied by the module's forward:
    #   cnn_features: (batch, cnn_output_size); hidden_size; num_labels steps.
    B, C, H, L = 2, 16, 32, 8

    key = jax.random.PRNGKey(0)
    ks = jax.random.split(key, 6)

    def xavier_uniform(k, shape):
        fan_out, fan_in = shape
        bound = float((6.0 / (fan_in + fan_out)) ** 0.5)
        return jax.random.uniform(k, shape, jnp.float32, -bound, bound)

    lstm_bound = float(1.0 / (H ** 0.5))
    params = {
        # nn.Linear(cnn_output_size, hidden_size): xavier weight, zero bias
        "w_img": xavier_uniform(ks[0], (H, C)),
        "b_img": jnp.zeros((H,), jnp.float32),
        # nn.LSTM(1, H): default uniform(-1/sqrt(H), 1/sqrt(H)) init.
        # weight_ih_l0 is unused (LSTM inputs are all zero), so it is omitted.
        "w_hh": jax.random.uniform(ks[1], (4 * H, H), jnp.float32,
                                   -lstm_bound, lstm_bound),
        "b_ih": jax.random.uniform(ks[2], (4 * H,), jnp.float32,
                                   -lstm_bound, lstm_bound),
        "b_hh": jax.random.uniform(ks[3], (4 * H,), jnp.float32,
                                   -lstm_bound, lstm_bound),
        # nn.Linear(hidden_size, 1): xavier weight, zero bias
        "w_fin": xavier_uniform(ks[4], (1, H)),
        "b_fin": jnp.zeros((1,), jnp.float32),
    }

    cnn_features = jax.random.normal(ks[5], (B, C), jnp.float32)

    prepped = prepare_params(params)          # one-time layout work
    out = decoder_binary_rnn(cnn_features, prepped, L)
    out = jax.block_until_ready(out)

    ref = reference(cnn_features, params, L)
    assert out.shape == (B, L, 1), out.shape
    np.testing.assert_allclose(np.asarray(out), np.asarray(ref),
                               rtol=1e-5, atol=1e-5)
    print("KERNEL_OK")
</pallas_src>

<mosaic_0001>
module attributes {stable_mosaic.version = 11 : i64} {
  func.func @decoder_binary_rnn_kernel(%arg0: i32, %arg1: memref<2x16xf32, #tpu.memory_space<vmem>>, %arg2: memref<16x32xf32, #tpu.memory_space<vmem>>, %arg3: memref<1x32xf32, #tpu.memory_space<vmem>>, %arg4: memref<32x128xf32, #tpu.memory_space<vmem>>, %arg5: memref<1x128xf32, #tpu.memory_space<vmem>>, %arg6: memref<32x1xf32, #tpu.memory_space<vmem>>, %arg7: memref<1x1xf32, #tpu.memory_space<vmem>>, %arg8: memref<2x8xf32, #tpu.memory_space<vmem>>) attributes {dimension_semantics = [#tpu.dimension_semantics<parallel>], iteration_bounds = array<i64: 1>, scalar_prefetch = 0 : i64, scratch_operands = 0 : i64, tpu.core_type = #tpu.core_type<tc>, window_params = [{transform_indices = @transform_0, window_bounds = array<i64: 2, 16>}, {pipeline_mode = #tpu.pipeline_mode<synchronous>, transform_indices = @transform_1, window_bounds = array<i64: 16, 32>}, {pipeline_mode = #tpu.pipeline_mode<synchronous>, transform_indices = @transform_2, window_bounds = array<i64: 1, 32>}, {pipeline_mode = #tpu.pipeline_mode<synchronous>, transform_indices = @transform_3, window_bounds = array<i64: 32, 128>}, {pipeline_mode = #tpu.pipeline_mode<synchronous>, transform_indices = @transform_4, window_bounds = array<i64: 1, 128>}, {pipeline_mode = #tpu.pipeline_mode<synchronous>, transform_indices = @transform_5, window_bounds = array<i64: 32, 1>}, {pipeline_mode = #tpu.pipeline_mode<synchronous>, transform_indices = @transform_6, window_bounds = array<i64: 1, 1>}, {transform_indices = @transform_7, window_bounds = array<i64: 2, 8>}]} {
    %c0 = arith.constant 0 : index
    %c0_0 = arith.constant 0 : index
    %0 = vector.load %arg4[%c0, %c0_0] : memref<32x128xf32, #tpu.memory_space<vmem>>, vector<32x128xf32>
    %c0_1 = arith.constant 0 : index
    %c0_2 = arith.constant 0 : index
    %1 = vector.load %arg5[%c0_1, %c0_2] : memref<1x128xf32, #tpu.memory_space<vmem>>, vector<1x128xf32>
    %c0_3 = arith.constant 0 : index
    %c0_4 = arith.constant 0 : index
    %2 = vector.load %arg6[%c0_3, %c0_4] : memref<32x1xf32, #tpu.memory_space<vmem>>, vector<32x1xf32>
    %c0_5 = arith.constant 0 : index
    %c0_6 = arith.constant 0 : index
    %3 = vector.load %arg7[%c0_5, %c0_6] : memref<1x1xf32, #tpu.memory_space<vmem>>, vector<1x1xf32>
    %c0_7 = arith.constant 0 : index
    %c0_8 = arith.constant 0 : index
    %4 = vector.load %arg1[%c0_7, %c0_8] : memref<2x16xf32, #tpu.memory_space<vmem>>, vector<2x16xf32>
    %c0_9 = arith.constant 0 : index
    %c0_10 = arith.constant 0 : index
    %5 = vector.load %arg2[%c0_9, %c0_10] : memref<16x32xf32, #tpu.memory_space<vmem>>, vector<16x32xf32>
    %cst = arith.constant dense<0.000000e+00> : vector<2x32xf32>
    %6 = tpu.matmul %4, %5, %cst {dimension_numbers = #tpu.dot_dimension_numbers<[1], [0], [0], [1], [0, 0, 1, 1], [], []>} : vector<2x16xf32>, vector<16x32xf32>, vector<2x32xf32> -> vector<2x32xf32>
    %c0_11 = arith.constant 0 : index
    %c0_12 = arith.constant 0 : index
    %7 = vector.load %arg3[%c0_11, %c0_12] : memref<1x32xf32, #tpu.memory_space<vmem>>, vector<1x32xf32>
    %8 = vector.broadcast %7 : vector<1x32xf32> to vector<2x32xf32>
    %9 = arith.addf %6, %8 : vector<2x32xf32>
    %cst_13 = arith.constant 0.000000e+00 : f32
    %10 = vector.broadcast %cst_13 : f32 to vector<2x32xf32>
    %cst_14 = arith.constant dense<0.000000e+00> : vector<2x128xf32>
    %11 = tpu.matmul %9, %0, %cst_14 {dimension_numbers = #tpu.dot_dimension_numbers<[1], [0], [0], [1], [0, 0, 1, 1], [], []>} : vector<2x32xf32>, vector<32x128xf32>, vector<2x128xf32> -> vector<2x128xf32>
    %12 = vector.broadcast %1 : vector<1x128xf32> to vector<2x128xf32>
    %13 = arith.addf %11, %12 : vector<2x128xf32>
    %14 = vector.extract_strided_slice %13 {offsets = [0, 0], sizes = [2, 96], strides = [1, 1]} : vector<2x128xf32> to vector<2x96xf32>
    %15 = arith.negf %14 : vector<2x96xf32>
    %16 = math.exp %15 : vector<2x96xf32>
    %cst_15 = arith.constant 1.000000e+00 : f32
    %17 = vector.broadcast %cst_15 : f32 to vector<2x96xf32>
    %18 = arith.addf %17, %16 : vector<2x96xf32>
    %19 = arith.divf %17, %18 : vector<2x96xf32>
    %20 = vector.extract_strided_slice %13 {offsets = [0, 96], sizes = [2, 32], strides = [1, 1]} : vector<2x128xf32> to vector<2x32xf32>
    %21 = math.tanh %20 : vector<2x32xf32>
    %22 = vector.extract_strided_slice %19 {offsets = [0, 32], sizes = [2, 32], strides = [1, 1]} : vector<2x96xf32> to vector<2x32xf32>
    %23 = arith.mulf %22, %10 : vector<2x32xf32>
    %24 = vector.extract_strided_slice %19 {offsets = [0, 0], sizes = [2, 32], strides = [1, 1]} : vector<2x96xf32> to vector<2x32xf32>
    %25 = arith.mulf %24, %21 : vector<2x32xf32>
    %26 = arith.addf %23, %25 : vector<2x32xf32>
    %27 = vector.extract_strided_slice %19 {offsets = [0, 64], sizes = [2, 32], strides = [1, 1]} : vector<2x96xf32> to vector<2x32xf32>
    %28 = math.tanh %26 : vector<2x32xf32>
    %29 = arith.mulf %27, %28 : vector<2x32xf32>
    %cst_16 = arith.constant dense<0.000000e+00> : vector<2x128xf32>
    %30 = tpu.matmul %29, %0, %cst_16 {dimension_numbers = #tpu.dot_dimension_numbers<[1], [0], [0], [1], [0, 0, 1, 1], [], []>} : vector<2x32xf32>, vector<32x128xf32>, vector<2x128xf32> -> vector<2x128xf32>
    %31 = vector.broadcast %1 : vector<1x128xf32> to vector<2x128xf32>
    %32 = arith.addf %30, %31 : vector<2x128xf32>
    %33 = vector.extract_strided_slice %32 {offsets = [0, 0], sizes = [2, 96], strides = [1, 1]} : vector<2x128xf32> to vector<2x96xf32>
    %34 = arith.negf %33 : vector<2x96xf32>
    %35 = math.exp %34 : vector<2x96xf32>
    %cst_17 = arith.constant 1.000000e+00 : f32
    %36 = vector.broadcast %cst_17 : f32 to vector<2x96xf32>
    %37 = arith.addf %36, %35 : vector<2x96xf32>
    %38 = arith.divf %36, %37 : vector<2x96xf32>
    %39 = vector.extract_strided_slice %32 {offsets = [0, 96], sizes = [2, 32], strides = [1, 1]} : vector<2x128xf32> to vector<2x32xf32>
    %40 = math.tanh %39 : vector<2x32xf32>
    %41 = vector.extract_strided_slice %38 {offsets = [0, 32], sizes = [2, 32], strides = [1, 1]} : vector<2x96xf32> to vector<2x32xf32>
    %42 = arith.mulf %41, %26 : vector<2x32xf32>
    %43 = vector.extract_strided_slice %38 {offsets = [0, 0], sizes = [2, 32], strides = [1, 1]} : vector<2x96xf32> to vector<2x32xf32>
    %44 = arith.mulf %43, %40 : vector<2x32xf32>
    %45 = arith.addf %42, %44 : vector<2x32xf32>
    %46 = vector.extract_strided_slice %38 {offsets = [0, 64], sizes = [2, 32], strides = [1, 1]} : vector<2x96xf32> to vector<2x32xf32>
    %47 = math.tanh %45 : vector<2x32xf32>
    %48 = arith.mulf %46, %47 : vector<2x32xf32>
    %cst_18 = arith.constant dense<0.000000e+00> : vector<2x128xf32>
    %49 = tpu.matmul %48, %0, %cst_18 {dimension_numbers = #tpu.dot_dimension_numbers<[1], [0], [0], [1], [0, 0, 1, 1], [], []>} : vector<2x32xf32>, vector<32x128xf32>, vector<2x128xf32> -> vector<2x128xf32>
    %50 = vector.broadcast %1 : vector<1x128xf32> to vector<2x128xf32>
    %51 = arith.addf %49, %50 : vector<2x128xf32>
    %52 = vector.extract_strided_slice %51 {offsets = [0, 0], sizes = [2, 96], strides = [1, 1]} : vector<2x128xf32> to vector<2x96xf32>
    %53 = arith.negf %52 : vector<2x96xf32>
    %54 = math.exp %53 : vector<2x96xf32>
    %cst_19 = arith.constant 1.000000e+00 : f32
    %55 = vector.broadcast %cst_19 : f32 to vector<2x96xf32>
    %56 = arith.addf %55, %54 : vector<2x96xf32>
    %57 = arith.divf %55, %56 : vector<2x96xf32>
    %58 = vector.extract_strided_slice %51 {offsets = [0, 96], sizes = [2, 32], strides = [1, 1]} : vector<2x128xf32> to vector<2x32xf32>
    %59 = math.tanh %58 : vector<2x32xf32>
    %60 = vector.extract_strided_slice %57 {offsets = [0, 32], sizes = [2, 32], strides = [1, 1]} : vector<2x96xf32> to vector<2x32xf32>
    %61 = arith.mulf %60, %45 : vector<2x32xf32>
    %62 = vector.extract_strided_slice %57 {offsets = [0, 0], sizes = [2, 32], strides = [1, 1]} : vector<2x96xf32> to vector<2x32xf32>
    %63 = arith.mulf %62, %59 : vector<2x32xf32>
    %64 = arith.addf %61, %63 : vector<2x32xf32>
    %65 = vector.extract_strided_slice %57 {offsets = [0, 64], sizes = [2, 32], strides = [1, 1]} : vector<2x96xf32> to vector<2x32xf32>
    %66 = math.tanh %64 : vector<2x32xf32>
    %67 = arith.mulf %65, %66 : vector<2x32xf32>
    %cst_20 = arith.constant dense<0.000000e+00> : vector<2x128xf32>
    %68 = tpu.matmul %67, %0, %cst_20 {dimension_numbers = #tpu.dot_dimension_numbers<[1], [0], [0], [1], [0, 0, 1, 1], [], []>} : vector<2x32xf32>, vector<32x128xf32>, vector<2x128xf32> -> vector<2x128xf32>
    %69 = vector.broadcast %1 : vector<1x128xf32> to vector<2x128xf32>
    %70 = arith.addf %68, %69 : vector<2x128xf32>
    %71 = vector.extract_strided_slice %70 {offsets = [0, 0], sizes = [2, 96], strides = [1, 1]} : vector<2x128xf32> to vector<2x96xf32>
    %72 = arith.negf %71 : vector<2x96xf32>
    %73 = math.exp %72 : vector<2x96xf32>
    %cst_21 = arith.constant 1.000000e+00 : f32
    %74 = vector.broadcast %cst_21 : f32 to vector<2x96xf32>
    %75 = arith.addf %74, %73 : vector<2x96xf32>
    %76 = arith.divf %74, %75 : vector<2x96xf32>
    %77 = vector.extract_strided_slice %70 {offsets = [0, 96], sizes = [2, 32], strides = [1, 1]} : vector<2x128xf32> to vector<2x32xf32>
    %78 = math.tanh %77 : vector<2x32xf32>
    %79 = vector.extract_strided_slice %76 {offsets = [0, 32], sizes = [2, 32], strides = [1, 1]} : vector<2x96xf32> to vector<2x32xf32>
    %80 = arith.mulf %79, %64 : vector<2x32xf32>
    %81 = vector.extract_strided_slice %76 {offsets = [0, 0], sizes = [2, 32], strides = [1, 1]} : vector<2x96xf32> to vector<2x32xf32>
    %82 = arith.mulf %81, %78 : vector<2x32xf32>
    %83 = arith.addf %80, %82 : vector<2x32xf32>
    %84 = vector.extract_strided_slice %76 {offsets = [0, 64], sizes = [2, 32], strides = [1, 1]} : vector<2x96xf32> to vector<2x32xf32>
    %85 = math.tanh %83 : vector<2x32xf32>
    %86 = arith.mulf %84, %85 : vector<2x32xf32>
    %cst_22 = arith.constant dense<0.000000e+00> : vector<2x128xf32>
    %87 = tpu.matmul %86, %0, %cst_22 {dimension_numbers = #tpu.dot_dimension_numbers<[1], [0], [0], [1], [0, 0, 1, 1], [], []>} : vector<2x32xf32>, vector<32x128xf32>, vector<2x128xf32> -> vector<2x128xf32>
    %88 = vector.broadcast %1 : vector<1x128xf32> to vector<2x128xf32>
    %89 = arith.addf %87, %88 : vector<2x128xf32>
    %90 = vector.extract_strided_slice %89 {offsets = [0, 0], sizes = [2, 96], strides = [1, 1]} : vector<2x128xf32> to vector<2x96xf32>
    %91 = arith.negf %90 : vector<2x96xf32>
    %92 = math.exp %91 : vector<2x96xf32>
    %cst_23 = arith.constant 1.000000e+00 : f32
    %93 = vector.broadcast %cst_23 : f32 to vector<2x96xf32>
    %94 = arith.addf %93, %92 : vector<2x96xf32>
    %95 = arith.divf %93, %94 : vector<2x96xf32>
    %96 = vector.extract_strided_slice %89 {offsets = [0, 96], sizes = [2, 32], strides = [1, 1]} : vector<2x128xf32> to vector<2x32xf32>
    %97 = math.tanh %96 : vector<2x32xf32>
    %98 = vector.extract_strided_slice %95 {offsets = [0, 32], sizes = [2, 32], strides = [1, 1]} : vector<2x96xf32> to vector<2x32xf32>
    %99 = arith.mulf %98, %83 : vector<2x32xf32>
    %100 = vector.extract_strided_slice %95 {offsets = [0, 0], sizes = [2, 32], strides = [1, 1]} : vector<2x96xf32> to vector<2x32xf32>
    %101 = arith.mulf %100, %97 : vector<2x32xf32>
    %102 = arith.addf %99, %101 : vector<2x32xf32>
    %103 = vector.extract_strided_slice %95 {offsets = [0, 64], sizes = [2, 32], strides = [1, 1]} : vector<2x96xf32> to vector<2x32xf32>
    %104 = math.tanh %102 : vector<2x32xf32>
    %105 = arith.mulf %103, %104 : vector<2x32xf32>
    %cst_24 = arith.constant dense<0.000000e+00> : vector<2x128xf32>
    %106 = tpu.matmul %105, %0, %cst_24 {dimension_numbers = #tpu.dot_dimension_numbers<[1], [0], [0], [1], [0, 0, 1, 1], [], []>} : vector<2x32xf32>, vector<32x128xf32>, vector<2x128xf32> -> vector<2x128xf32>
    %107 = vector.broadcast %1 : vector<1x128xf32> to vector<2x128xf32>
    %108 = arith.addf %106, %107 : vector<2x128xf32>
    %109 = vector.extract_strided_slice %108 {offsets = [0, 0], sizes = [2, 96], strides = [1, 1]} : vector<2x128xf32> to vector<2x96xf32>
    %110 = arith.negf %109 : vector<2x96xf32>
    %111 = math.exp %110 : vector<2x96xf32>
    %cst_25 = arith.constant 1.000000e+00 : f32
    %112 = vector.broadcast %cst_25 : f32 to vector<2x96xf32>
    %113 = arith.addf %112, %111 : vector<2x96xf32>
    %114 = arith.divf %112, %113 : vector<2x96xf32>
    %115 = vector.extract_strided_slice %108 {offsets = [0, 96], sizes = [2, 32], strides = [1, 1]} : vector<2x128xf32> to vector<2x32xf32>
    %116 = math.tanh %115 : vector<2x32xf32>
    %117 = vector.extract_strided_slice %114 {offsets = [0, 32], sizes = [2, 32], strides = [1, 1]} : vector<2x96xf32> to vector<2x32xf32>
    %118 = arith.mulf %117, %102 : vector<2x32xf32>
    %119 = vector.extract_strided_slice %114 {offsets = [0, 0], sizes = [2, 32], strides = [1, 1]} : vector<2x96xf32> to vector<2x32xf32>
    %120 = arith.mulf %119, %116 : vector<2x32xf32>
    %121 = arith.addf %118, %120 : vector<2x32xf32>
    %122 = vector.extract_strided_slice %114 {offsets = [0, 64], sizes = [2, 32], strides = [1, 1]} : vector<2x96xf32> to vector<2x32xf32>
    %123 = math.tanh %121 : vector<2x32xf32>
    %124 = arith.mulf %122, %123 : vector<2x32xf32>
    %cst_26 = arith.constant dense<0.000000e+00> : vector<2x128xf32>
    %125 = tpu.matmul %124, %0, %cst_26 {dimension_numbers = #tpu.dot_dimension_numbers<[1], [0], [0], [1], [0, 0, 1, 1], [], []>} : vector<2x32xf32>, vector<32x128xf32>, vector<2x128xf32> -> vector<2x128xf32>
    %126 = vector.broadcast %1 : vector<1x128xf32> to vector<2x128xf32>
    %127 = arith.addf %125, %126 : vector<2x128xf32>
    %128 = vector.extract_strided_slice %127 {offsets = [0, 0], sizes = [2, 96], strides = [1, 1]} : vector<2x128xf32> to vector<2x96xf32>
    %129 = arith.negf %128 : vector<2x96xf32>
    %130 = math.exp %129 : vector<2x96xf32>
    %cst_27 = arith.constant 1.000000e+00 : f32
    %131 = vector.broadcast %cst_27 : f32 to vector<2x96xf32>
    %132 = arith.addf %131, %130 : vector<2x96xf32>
    %133 = arith.divf %131, %132 : vector<2x96xf32>
    %134 = vector.extract_strided_slice %127 {offsets = [0, 96], sizes = [2, 32], strides = [1, 1]} : vector<2x128xf32> to vector<2x32xf32>
    %135 = math.tanh %134 : vector<2x32xf32>
    %136 = vector.extract_strided_slice %133 {offsets = [0, 32], sizes = [2, 32], strides = [1, 1]} : vector<2x96xf32> to vector<2x32xf32>
    %137 = arith.mulf %136, %121 : vector<2x32xf32>
    %138 = vector.extract_strided_slice %133 {offsets = [0, 0], sizes = [2, 32], strides = [1, 1]} : vector<2x96xf32> to vector<2x32xf32>
    %139 = arith.mulf %138, %135 : vector<2x32xf32>
    %140 = arith.addf %137, %139 : vector<2x32xf32>
    %141 = vector.extract_strided_slice %133 {offsets = [0, 64], sizes = [2, 32], strides = [1, 1]} : vector<2x96xf32> to vector<2x32xf32>
    %142 = math.tanh %140 : vector<2x32xf32>
    %143 = arith.mulf %141, %142 : vector<2x32xf32>
    %cst_28 = arith.constant dense<0.000000e+00> : vector<2x128xf32>
    %144 = tpu.matmul %143, %0, %cst_28 {dimension_numbers = #tpu.dot_dimension_numbers<[1], [0], [0], [1], [0, 0, 1, 1], [], []>} : vector<2x32xf32>, vector<32x128xf32>, vector<2x128xf32> -> vector<2x128xf32>
    %145 = vector.broadcast %1 : vector<1x128xf32> to vector<2x128xf32>
    %146 = arith.addf %144, %145 : vector<2x128xf32>
    %147 = vector.extract_strided_slice %146 {offsets = [0, 0], sizes = [2, 96], strides = [1, 1]} : vector<2x128xf32> to vector<2x96xf32>
    %148 = arith.negf %147 : vector<2x96xf32>
    %149 = math.exp %148 : vector<2x96xf32>
    %cst_29 = arith.constant 1.000000e+00 : f32
    %150 = vector.broadcast %cst_29 : f32 to vector<2x96xf32>
    %151 = arith.addf %150, %149 : vector<2x96xf32>
    %152 = arith.divf %150, %151 : vector<2x96xf32>
    %153 = vector.extract_strided_slice %146 {offsets = [0, 96], sizes = [2, 32], strides = [1, 1]} : vector<2x128xf32> to vector<2x32xf32>
    %154 = math.tanh %153 : vector<2x32xf32>
    %155 = vector.extract_strided_slice %152 {offsets = [0, 32], sizes = [2, 32], strides = [1, 1]} : vector<2x96xf32> to vector<2x32xf32>
    %156 = arith.mulf %155, %140 : vector<2x32xf32>
    %157 = vector.extract_strided_slice %152 {offsets = [0, 0], sizes = [2, 32], strides = [1, 1]} : vector<2x96xf32> to vector<2x32xf32>
    %158 = arith.mulf %157, %154 : vector<2x32xf32>
    %159 = arith.addf %156, %158 : vector<2x32xf32>
    %160 = vector.extract_strided_slice %152 {offsets = [0, 64], sizes = [2, 32], strides = [1, 1]} : vector<2x96xf32> to vector<2x32xf32>
    %161 = math.tanh %159 : vector<2x32xf32>
    %162 = arith.mulf %160, %161 : vector<2x32xf32>
    %163 = tpu.iota {dimensions = array<i32: 1>} : vector<2x8xi32>
    %cst_30 = arith.constant 0.000000e+00 : f32
    %164 = vector.broadcast %cst_30 : f32 to vector<2x8xf32>
    %cst_31 = arith.constant dense<0.000000e+00> : vector<2x1xf32>
    %165 = tpu.matmul %29, %2, %cst_31 {dimension_numbers = #tpu.dot_dimension_numbers<[1], [0], [0], [1], [0, 0, 1, 1], [], []>} : vector<2x32xf32>, vector<32x1xf32>, vector<2x1xf32> -> vector<2x1xf32>
    %c0_i32 = arith.constant 0 : i32
    %166 = vector.broadcast %c0_i32 : i32 to vector<2x8xi32>
    %167 = arith.cmpi eq, %163, %166 : vector<2x8xi32>
    %168 = vector.shape_cast %165 : vector<2x1xf32> to vector<2x1xf32>
    %169 = vector.broadcast %168 : vector<2x1xf32> to vector<2x8xf32>
    %170 = arith.select %167, %169, %164 : vector<2x8xi1>, vector<2x8xf32>
    %cst_32 = arith.constant dense<0.000000e+00> : vector<2x1xf32>
    %171 = tpu.matmul %48, %2, %cst_32 {dimension_numbers = #tpu.dot_dimension_numbers<[1], [0], [0], [1], [0, 0, 1, 1], [], []>} : vector<2x32xf32>, vector<32x1xf32>, vector<2x1xf32> -> vector<2x1xf32>
    %c1_i32 = arith.constant 1 : i32
    %172 = vector.broadcast %c1_i32 : i32 to vector<2x8xi32>
    %173 = arith.cmpi eq, %163, %172 : vector<2x8xi32>
    %174 = vector.shape_cast %171 : vector<2x1xf32> to vector<2x1xf32>
    %175 = vector.broadcast %174 : vector<2x1xf32> to vector<2x8xf32>
    %176 = arith.select %173, %175, %170 : vector<2x8xi1>, vector<2x8xf32>
    %cst_33 = arith.constant dense<0.000000e+00> : vector<2x1xf32>
    %177 = tpu.matmul %67, %2, %cst_33 {dimension_numbers = #tpu.dot_dimension_numbers<[1], [0], [0], [1], [0, 0, 1, 1], [], []>} : vector<2x32xf32>, vector<32x1xf32>, vector<2x1xf32> -> vector<2x1xf32>
    %c2_i32 = arith.constant 2 : i32
    %178 = vector.broadcast %c2_i32 : i32 to vector<2x8xi32>
    %179 = arith.cmpi eq, %163, %178 : vector<2x8xi32>
    %180 = vector.shape_cast %177 : vector<2x1xf32> to vector<2x1xf32>
    %181 = vector.broadcast %180 : vector<2x1xf32> to vector<2x8xf32>
    %182 = arith.select %179, %181, %176 : vector<2x8xi1>, vector<2x8xf32>
    %cst_34 = arith.constant dense<0.000000e+00> : vector<2x1xf32>
    %183 = tpu.matmul %86, %2, %cst_34 {dimension_numbers = #tpu.dot_dimension_numbers<[1], [0], [0], [1], [0, 0, 1, 1], [], []>} : vector<2x32xf32>, vector<32x1xf32>, vector<2x1xf32> -> vector<2x1xf32>
    %c3_i32 = arith.constant 3 : i32
    %184 = vector.broadcast %c3_i32 : i32 to vector<2x8xi32>
    %185 = arith.cmpi eq, %163, %184 : vector<2x8xi32>
    %186 = vector.shape_cast %183 : vector<2x1xf32> to vector<2x1xf32>
    %187 = vector.broadcast %186 : vector<2x1xf32> to vector<2x8xf32>
    %188 = arith.select %185, %187, %182 : vector<2x8xi1>, vector<2x8xf32>
    %cst_35 = arith.constant dense<0.000000e+00> : vector<2x1xf32>
    %189 = tpu.matmul %105, %2, %cst_35 {dimension_numbers = #tpu.dot_dimension_numbers<[1], [0], [0], [1], [0, 0, 1, 1], [], []>} : vector<2x32xf32>, vector<32x1xf32>, vector<2x1xf32> -> vector<2x1xf32>
    %c4_i32 = arith.constant 4 : i32
    %190 = vector.broadcast %c4_i32 : i32 to vector<2x8xi32>
    %191 = arith.cmpi eq, %163, %190 : vector<2x8xi32>
    %192 = vector.shape_cast %189 : vector<2x1xf32> to vector<2x1xf32>
    %193 = vector.broadcast %192 : vector<2x1xf32> to vector<2x8xf32>
    %194 = arith.select %191, %193, %188 : vector<2x8xi1>, vector<2x8xf32>
    %cst_36 = arith.constant dense<0.000000e+00> : vector<2x1xf32>
    %195 = tpu.matmul %124, %2, %cst_36 {dimension_numbers = #tpu.dot_dimension_numbers<[1], [0], [0], [1], [0, 0, 1, 1], [], []>} : vector<2x32xf32>, vector<32x1xf32>, vector<2x1xf32> -> vector<2x1xf32>
    %c5_i32 = arith.constant 5 : i32
    %196 = vector.broadcast %c5_i32 : i32 to vector<2x8xi32>
    %197 = arith.cmpi eq, %163, %196 : vector<2x8xi32>
    %198 = vector.shape_cast %195 : vector<2x1xf32> to vector<2x1xf32>
    %199 = vector.broadcast %198 : vector<2x1xf32> to vector<2x8xf32>
    %200 = arith.select %197, %199, %194 : vector<2x8xi1>, vector<2x8xf32>
    %cst_37 = arith.constant dense<0.000000e+00> : vector<2x1xf32>
    %201 = tpu.matmul %143, %2, %cst_37 {dimension_numbers = #tpu.dot_dimension_numbers<[1], [0], [0], [1], [0, 0, 1, 1], [], []>} : vector<2x32xf32>, vector<32x1xf32>, vector<2x1xf32> -> vector<2x1xf32>
    %c6_i32 = arith.constant 6 : i32
    %202 = vector.broadcast %c6_i32 : i32 to vector<2x8xi32>
    %203 = arith.cmpi eq, %163, %202 : vector<2x8xi32>
    %204 = vector.shape_cast %201 : vector<2x1xf32> to vector<2x1xf32>
    %205 = vector.broadcast %204 : vector<2x1xf32> to vector<2x8xf32>
    %206 = arith.select %203, %205, %200 : vector<2x8xi1>, vector<2x8xf32>
    %cst_38 = arith.constant dense<0.000000e+00> : vector<2x1xf32>
    %207 = tpu.matmul %162, %2, %cst_38 {dimension_numbers = #tpu.dot_dimension_numbers<[1], [0], [0], [1], [0, 0, 1, 1], [], []>} : vector<2x32xf32>, vector<32x1xf32>, vector<2x1xf32> -> vector<2x1xf32>
    %c7_i32 = arith.constant 7 : i32
    %208 = vector.broadcast %c7_i32 : i32 to vector<2x8xi32>
    %209 = arith.cmpi eq, %163, %208 : vector<2x8xi32>
    %210 = vector.shape_cast %207 : vector<2x1xf32> to vector<2x1xf32>
    %211 = vector.broadcast %210 : vector<2x1xf32> to vector<2x8xf32>
    %212 = arith.select %209, %211, %206 : vector<2x8xi1>, vector<2x8xf32>
    %213 = vector.broadcast %3 : vector<1x1xf32> to vector<2x8xf32>
    %214 = arith.addf %212, %213 : vector<2x8xf32>
    %c0_39 = arith.constant 0 : index
    %c0_40 = arith.constant 0 : index
    %215 = vector.load %arg8[%c0_39, %c0_40] : memref<2x8xf32, #tpu.memory_space<vmem>>, vector<2x8xf32>
    tpu.vector_store %arg8[%c0_39, %c0_40], %214 {strides = array<i32>} : memref<2x8xf32, #tpu.memory_space<vmem>>, vector<2x8xf32>,
    return
  }
  func.func @transform_0(%arg0: i32) -> (i32, i32) {
    %c0_i32 = arith.constant 0 : i32
    %c0_i32_0 = arith.constant 0 : i32
    return %arg0, %c0_i32 : i32, i32
  }
  func.func @transform_1(%arg0: i32) -> (i32, i32) {
    %c0_i32 = arith.constant 0 : i32
    %c0_i32_0 = arith.constant 0 : i32
    %c0_i32_1 = arith.constant 0 : i32
    return %c0_i32, %c0_i32_0 : i32, i32
  }
  func.func @transform_2(%arg0: i32) -> (i32, i32) {
    %c0_i32 = arith.constant 0 : i32
    %c0_i32_0 = arith.constant 0 : i32
    %c0_i32_1 = arith.constant 0 : i32
    return %c0_i32, %c0_i32_0 : i32, i32
  }
  func.func @transform_3(%arg0: i32) -> (i32, i32) {
    %c0_i32 = arith.constant 0 : i32
    %c0_i32_0 = arith.constant 0 : i32
    %c0_i32_1 = arith.constant 0 : i32
    return %c0_i32, %c0_i32_0 : i32, i32
  }
  func.func @transform_4(%arg0: i32) -> (i32, i32) {
    %c0_i32 = arith.constant 0 : i32
    %c0_i32_0 = arith.constant 0 : i32
    %c0_i32_1 = arith.constant 0 : i32
    return %c0_i32, %c0_i32_0 : i32, i32
  }
  func.func @transform_5(%arg0: i32) -> (i32, i32) {
    %c0_i32 = arith.constant 0 : i32
    %c0_i32_0 = arith.constant 0 : i32
    %c0_i32_1 = arith.constant 0 : i32
    return %c0_i32, %c0_i32_0 : i32, i32
  }
  func.func @transform_6(%arg0: i32) -> (i32, i32) {
    %c0_i32 = arith.constant 0 : i32
    %c0_i32_0 = arith.constant 0 : i32
    %c0_i32_1 = arith.constant 0 : i32
    return %c0_i32, %c0_i32_0 : i32, i32
  }
  func.func @transform_7(%arg0: i32) -> (i32, i32) {
    %c0_i32 = arith.constant 0 : i32
    %c0_i32_0 = arith.constant 0 : i32
    return %arg0, %c0_i32 : i32, i32
  }
}

</mosaic_0001>

<llo_original>
// kernel: tpu_custom_call.1
$region0: #{tpu_custom_call.1}
  #allocation0 [shape = 'u32[]', space=smem, size = 0x4, offset = 0x4, fixed_abs, tag = 'smem constant byte address 0x4 - core index']
  #allocation1 [shape = 'u32[144,128]{1,0:T(1,128)}', space=vmem, size = 0x12000, scoped, tag = 'internal scratch']
  #allocation2 [shape = 'f32[1,1]{1,0:T(1,128)S(1)}', space=vmem, size = 0x200, scoped, tag = 'scoped memory for tpu_custom_call.1']
  %s0 = inlined_call_operand.hbm [shape: f32[2,16], index: 0, kind: input, shape index: {}]
  %s1 = inlined_call_operand.vmem [shape: f32[16,32], index: 1, kind: input, shape index: {}]
  %s2 = inlined_call_operand.hbm [shape: f32[1,32], index: 2, kind: input, shape index: {}]
  %s3 = inlined_call_operand.vmem [shape: f32[32,128], index: 3, kind: input, shape index: {}]
  %s4 = inlined_call_operand.vmem [shape: f32[1,128], index: 4, kind: input, shape index: {}]
  %s5 = inlined_call_operand.vmem [shape: f32[32,1], index: 5, kind: input, shape index: {}]
  %s6 = inlined_call_operand.<no memory space> [shape: f32[1,1], index: 6, kind: input, shape index: {}]
  %s7 = inlined_call_operand.hbm [shape: f32[2,8], index: 7, kind: output, shape index: {}]
  %s8 = sld [smem:[#allocation0]]
  $region46: #{tpu_custom_call.1} parent=0
    _
  %s10 = ssub.s32 1, %s8
  %s11 = scalar_select 0, %s10, %s8
  %v12 = vstv %s6
  %13 = vst [vmem:[#allocation2] sm:$0x1] %v12
  $region1: #{tpu_custom_call.1} parent=0
    #allocation3 [shape = 'u8[1024]{0}', space=vmem, size = 0x400, scoped, tag = 'input window, operand 0, single buffered']
    #allocation4 [shape = 's32[1]{0}', space=sflag, size = 0x4, scoped, tag = 'scoped memory for tpu_custom_call.1']
    #allocation5 [shape = 's32[1]{0}', space=sflag, size = 0x4, scoped, tag = 'scoped memory for tpu_custom_call.1']
    #allocation6 [shape = 'u8[512]{0}', space=vmem, size = 0x400, scoped, tag = 'input window, operand 2, single buffered']
    #allocation7 [shape = 's32[1]{0}', space=sflag, size = 0x4, scoped, tag = 'scoped memory for tpu_custom_call.1']
    #allocation8 [shape = 'u8[1024]{0}', space=vmem, size = 0x400, scoped, tag = 'output window, operand 0, single buffered']
    %14 = vsyncpa [#allocation4], 0
    %15 = vsyncpa [#allocation7], 0
    %16 = vsyncpa [#allocation5], 0
    // Predicated region
    $region2: #{tpu_custom_call.1} parent=1 // pred_check
      _
    $region3: #{tpu_custom_call.1} parent=1 // pred_check_branch
      %18 = sbr.rel (0) target = $region5
    $region4: #{tpu_custom_call.1} parent=1 // pred_region
      %s20 = ssub.s32 32, 32
      %21 = vsyncadd [#allocation4], %s20
      %s23 = sshll.u32 [#allocation3], 4
      %s24 = int_to_ptr.vmem [resolvable:$true] %s23
      %26 = dma.hbm_to_vmem [thread:$0]  %s0, 32, %s24, [#allocation4]
    $region5: #{tpu_custom_call.1} parent=1 // pred_fallthru
      _
    // Predicated region
    $region6: #{tpu_custom_call.1} parent=1 // pred_check
      _
    $region7: #{tpu_custom_call.1} parent=1 // pred_check_branch
      %28 = sbr.rel (0) target = $region9
    $region8: #{tpu_custom_call.1} parent=1 // pred_region
      _
    $region9: #{tpu_custom_call.1} parent=1 // pred_fallthru
      _
    // Predicated region
    $region10: #{tpu_custom_call.1} parent=1 // pred_check
      _
    $region11: #{tpu_custom_call.1} parent=1 // pred_check_branch
      %30 = sbr.rel (0) target = $region13
    $region12: #{tpu_custom_call.1} parent=1 // pred_region
      %s32 = ssub.s32 16, 16
      %33 = vsyncadd [#allocation7], %s32
      %s35 = sshll.u32 [#allocation6], 4
      %s36 = int_to_ptr.vmem [resolvable:$true] %s35
      %38 = dma.hbm_to_vmem [thread:$0]  %s2, 16, %s36, [#allocation7]
    $region13: #{tpu_custom_call.1} parent=1 // pred_fallthru
      _
    // Predicated region
    $region14: #{tpu_custom_call.1} parent=1 // pred_check
      _
    $region15: #{tpu_custom_call.1} parent=1 // pred_check_branch
      %40 = sbr.rel (0) target = $region17
    $region16: #{tpu_custom_call.1} parent=1 // pred_region
      _
    $region17: #{tpu_custom_call.1} parent=1 // pred_fallthru
      _
    // Predicated region
    $region18: #{tpu_custom_call.1} parent=1 // pred_check
      _
    $region19: #{tpu_custom_call.1} parent=1 // pred_check_branch
      %42 = sbr.rel (0) target = $region21
    $region20: #{tpu_custom_call.1} parent=1 // pred_region
      _
    $region21: #{tpu_custom_call.1} parent=1 // pred_fallthru
      _
    // Predicated region
    $region22: #{tpu_custom_call.1} parent=1 // pred_check
      _
    $region23: #{tpu_custom_call.1} parent=1 // pred_check_branch
      %44 = sbr.rel (0) target = $region25
    $region24: #{tpu_custom_call.1} parent=1 // pred_region
      _
    $region25: #{tpu_custom_call.1} parent=1 // pred_fallthru
      _
    // Predicated region
    $region26: #{tpu_custom_call.1} parent=1 // pred_check
      _
    $region27: #{tpu_custom_call.1} parent=1 // pred_check_branch
      %46 = sbr.rel (0) target = $region29
    $region28: #{tpu_custom_call.1} parent=1 // pred_region
      _
    $region29: #{tpu_custom_call.1} parent=1 // pred_fallthru
      _
    // Predicated region
    $region30: #{tpu_custom_call.1} parent=1 // pred_check
      _
    $region31: #{tpu_custom_call.1} parent=1 // pred_check_branch
      %48 = sbr.rel (0) target = $region33
    $region32: #{tpu_custom_call.1} parent=1 // pred_region
      %49 = dma.done [#allocation4], 32
    $region33: #{tpu_custom_call.1} parent=1 // pred_fallthru
      _
    // Predicated region
    $region34: #{tpu_custom_call.1} parent=1 // pred_check
      _
    $region35: #{tpu_custom_call.1} parent=1 // pred_check_branch
      %51 = sbr.rel (0) target = $region37
    $region36: #{tpu_custom_call.1} parent=1 // pred_region
      %52 = dma.done [#allocation7], 16
    $region37: #{tpu_custom_call.1} parent=1 // pred_fallthru
      _
    %v53 = vld [vmem:[%s3] sm:$0xff]
    %v54 = vld [vmem:[%s3 + $0x8] sm:$0xff]
    %v55 = vld [vmem:[%s3 + $0x10] sm:$0xff]
    %v56 = vld [vmem:[%s3 + $0x18] sm:$0xff]
    %v57 = vld [vmem:[%s4] sm:$0x1]
    %v58 = vld [vmem:[%s5] sm:$0xff]
    %v59 = vld [vmem:[%s5 + $0x8] sm:$0xff]
    %v60 = vld [vmem:[%s5 + $0x10] sm:$0xff]
    %v61 = vld [vmem:[%s5 + $0x18] sm:$0xff]
    %v62 = vld [vmem:[#allocation2] sm:$0x1]
    %v63 = vld [vmem:[#allocation3] sm:$0x3]
    %v64 = vld [vmem:[%s1] sm:$0xff]
    %v65 = vld [vmem:[%s1 + $0x8] sm:$0xff]
    %v66 = vld [vmem:[#allocation6] sm:$0x1]
    %v68 = vlaneseq
    %v69 = vshrl.u32 %v68, 7
    %v70 = vsub.s32 0, %v69
    %v71 = vrot.slane %v66, %v70
    %vm73 = vcmask 130048
    %v75 = vsel %vm73, %v63, 0
    %77 = vmatprep.subr.mxu0 0.0
    %78 = vmatpush1.msra.mxu0 %v64
    %79 = vmatprep.subr.mxu0 0.0
    %80 = vmatpush1.msra.mxu0 %v65
    %81 = vmatprep.subr.mxu0 0.0
    %82 = vmatpush1.msra.mxu0 0.0
    %83 = vmatprep.subr.mxu0 0.0
    %84 = vmatpush1.msra.mxu0 0.0
    %85 = vmatprep.subr.mxu0 0.0
    %86 = vmatpush1.msra.mxu0 0.0
    %87 = vmatprep.subr.mxu0 0.0
    %88 = vmatpush1.msra.mxu0 0.0
    %89 = vmatprep.subr.mxu0 0.0
    %90 = vmatpush1.msra.mxu0 0.0
    %91 = vmatprep.subr.mxu0 0.0
    %92 = vmatpush1.msra.mxu0 0.0
    %93 = vmatprep.subr.mxu0 0.0
    %94 = vmatpush1.msra.mxu0 0.0
    %95 = vmatprep.subr.mxu0 0.0
    %96 = vmatpush1.msra.mxu0 0.0
    %97 = vmatprep.subr.mxu0 0.0
    %98 = vmatpush1.msra.mxu0 0.0
    %99 = vmatprep.subr.mxu0 0.0
    %100 = vmatpush1.msra.mxu0 0.0
    %101 = vmatprep.subr.mxu0 0.0
    %102 = vmatpush1.msra.mxu0 0.0
    %103 = vmatprep.subr.mxu0 0.0
    %104 = vmatpush1.msra.mxu0 0.0
    %105 = vmatprep.subr.mxu0 0.0
    %106 = vmatpush1.msra.mxu0 0.0
    %107 = vmatprep.subr.mxu0 0.0
    %108 = vmatpush1.msra.mxu0 0.0
    %109 = vmatprep.subr.mxu0 0.0
    %110 = vmatpush1.msra.mxu0 0.0
    %111 = vmatprep.subr.mxu0 0.0
    %112 = vmatpush1.msra.mxu0 0.0
    %113 = vmatprep.subr.mxu0 0.0
    %114 = vmatpush1.msra.mxu0 0.0
    %115 = vmatprep.subr.mxu0 0.0
    %116 = vmatpush1.msra.mxu0 0.0
    %117 = vmatprep.subr.mxu0 0.0
    %118 = vmatpush1.msra.mxu0 0.0
    %119 = vmatprep.subr.mxu0 0.0
    %120 = vmatpush1.msra.mxu0 0.0
    %121 = vmatprep.subr.mxu0 0.0
    %122 = vmatpush1.msra.mxu0 0.0
    %123 = vmatprep.subr.mxu0 0.0
    %124 = vmatpush1.msra.mxu0 0.0
    %125 = vmatprep.subr.mxu0 0.0
    %126 = vmatpush1.msra.mxu0 0.0
    %127 = vmatprep.subr.mxu0 0.0
    %128 = vmatpush1.msra.mxu0 0.0
    %129 = vmatprep.subr.mxu0 0.0
    %130 = vmatpush1.msra.mxu0 0.0
    %131 = vmatprep.subr.mxu0 0.0
    %132 = vmatpush1.msra.mxu0 0.0
    %133 = vmatprep.subr.mxu0 0.0
    %134 = vmatpush1.msra.mxu0 0.0
    %135 = vmatprep.subr.mxu0 0.0
    %136 = vmatpush1.msra.mxu0 0.0
    %137 = vmatprep.subr.mxu0 0.0
    %138 = vmatpush1.msra.mxu0 0.0
    %139 = vmatprep.subr.mxu0 0.0
    %140 = vmatpush1.msra.mxu0 0.0
    %141 = vmatprep.mubr.f32.mxu0 0.0
    %142 = vmatmul.mubr.f32.gmra.mrb[0].mxu0 %v75
    %v143 = vpop.f32.mrb[0].mxu0
    %v144 = vadd.f32 %v71, %v143
    %v145 = vpop.f32.mrb[0].mxu0
    %146 = vdwg.mxu0
    %v148 = vlaneseq
    %v149 = vshrl.u32 %v148, 7
    %v150 = vsub.s32 0, %v149
    %v151 = vrot.slane %v57, %v150
    %vm153 = vcmask 261120
    %v155 = vsel %vm153, %v144, 0
    %157 = vmatprep.subr.mxu0 0.0
    %158 = vmatpush1.msra.mxu0 %v53
    %159 = vmatprep.subr.mxu0 0.0
    %160 = vmatpush1.msra.mxu0 %v54
    %161 = vmatprep.subr.mxu0 0.0
    %162 = vmatpush1.msra.mxu0 %v55
    %163 = vmatprep.subr.mxu0 0.0
    %164 = vmatpush1.msra.mxu0 %v56
    %165 = vmatprep.subr.mxu0 0.0
    %166 = vmatpush1.msra.mxu0 0.0
    %167 = vmatprep.subr.mxu0 0.0
    %168 = vmatpush1.msra.mxu0 0.0
    %169 = vmatprep.subr.mxu0 0.0
    %170 = vmatpush1.msra.mxu0 0.0
    %171 = vmatprep.subr.mxu0 0.0
    %172 = vmatpush1.msra.mxu0 0.0
    %173 = vmatprep.subr.mxu0 0.0
    %174 = vmatpush1.msra.mxu0 0.0
    %175 = vmatprep.subr.mxu0 0.0
    %176 = vmatpush1.msra.mxu0 0.0
    %177 = vmatprep.subr.mxu0 0.0
    %178 = vmatpush1.msra.mxu0 0.0
    %179 = vmatprep.subr.mxu0 0.0
    %180 = vmatpush1.msra.mxu0 0.0
    %181 = vmatprep.subr.mxu0 0.0
    %182 = vmatpush1.msra.mxu0 0.0
    %183 = vmatprep.subr.mxu0 0.0
    %184 = vmatpush1.msra.mxu0 0.0
    %185 = vmatprep.subr.mxu0 0.0
    %186 = vmatpush1.msra.mxu0 0.0
    %187 = vmatprep.subr.mxu0 0.0
    %188 = vmatpush1.msra.mxu0 0.0
    %189 = vmatprep.subr.mxu0 0.0
    %190 = vmatpush1.msra.mxu0 0.0
    %191 = vmatprep.subr.mxu0 0.0
    %192 = vmatpush1.msra.mxu0 0.0
    %193 = vmatprep.subr.mxu0 0.0
    %194 = vmatpush1.msra.mxu0 0.0
    %195 = vmatprep.subr.mxu0 0.0
    %196 = vmatpush1.msra.mxu0 0.0
    %197 = vmatprep.subr.mxu0 0.0
    %198 = vmatpush1.msra.mxu0 0.0
    %199 = vmatprep.subr.mxu0 0.0
    %200 = vmatpush1.msra.mxu0 0.0
    %201 = vmatprep.subr.mxu0 0.0
    %202 = vmatpush1.msra.mxu0 0.0
    %203 = vmatprep.subr.mxu0 0.0
    %204 = vmatpush1.msra.mxu0 0.0
    %205 = vmatprep.subr.mxu0 0.0
    %206 = vmatpush1.msra.mxu0 0.0
    %207 = vmatprep.subr.mxu0 0.0
    %208 = vmatpush1.msra.mxu0 0.0
    %209 = vmatprep.subr.mxu0 0.0
    %210 = vmatpush1.msra.mxu0 0.0
    %211 = vmatprep.subr.mxu0 0.0
    %212 = vmatpush1.msra.mxu0 0.0
    %213 = vmatprep.subr.mxu0 0.0
    %214 = vmatpush1.msra.mxu0 0.0
    %215 = vmatprep.subr.mxu0 0.0
    %216 = vmatpush1.msra.mxu0 0.0
    %217 = vmatprep.subr.mxu0 0.0
    %218 = vmatpush1.msra.mxu0 0.0
    %219 = vmatprep.subr.mxu0 0.0
    %220 = vmatpush1.msra.mxu0 0.0
    %221 = vmatprep.mubr.f32.mxu0 0.0
    %222 = vmatmul.mubr.f32.gmra.mrb[0].mxu0 %v155
    %v223 = vpop.f32.mrb[0].mxu0
    %v224 = vadd.f32 %v151, %v223
    %v225 = vpop.f32.mrb[0].mxu0
    %226 = vdwg.mxu0
    %v227 = vxor.u32 %v224, 2147483648
    %v228 = vmul.f32 %v227, 1.442695
    %v229 = vpow.pop %v228
    %v230 = vadd.f32 %v229, 1.0
    %v231 = vrcp.pop %v230
    %v232 = vmul.f32 1.0, %v231
    %v233 = vtanh.pop %v224
    %v234 = vmul.f32 %v232, 0.0
    %236 = vrot.lane.b32.xlu0 %v233, 32
    %v237 = vpop.permute.xlu0 %236
    %v239 = vmul.f32 %v232, %v237
    %241 = vrot.lane.b32.xlu0 %v239, 32
    %v242 = vpop.permute.xlu0 %241
    %v244 = vadd.f32 %v234, %v242
    %v245 = vtanh.pop %v244
    %247 = vrot.lane.b32.xlu0 %v245, 32
    %v248 = vpop.permute.xlu0 %247
    %v250 = vmul.f32 %v232, %v248
    %252 = vrot.lane.b32.xlu0 %v250, 64
    %v253 = vpop.permute.xlu0 %252
    %v254 = vsel %vm153, %v253, 0
    %256 = vmatprep.subr.mxu0 0.0
    %257 = vmatpush1.msra.mxu0 %v53
    %258 = vmatprep.subr.mxu0 0.0
    %259 = vmatpush1.msra.mxu0 %v54
    %260 = vmatprep.subr.mxu0 0.0
    %261 = vmatpush1.msra.mxu0 %v55
    %262 = vmatprep.subr.mxu0 0.0
    %263 = vmatpush1.msra.mxu0 %v56
    %264 = vmatprep.subr.mxu0 0.0
    %265 = vmatpush1.msra.mxu0 0.0
    %266 = vmatprep.subr.mxu0 0.0
    %267 = vmatpush1.msra.mxu0 0.0
    %268 = vmatprep.subr.mxu0 0.0
    %269 = vmatpush1.msra.mxu0 0.0
    %270 = vmatprep.subr.mxu0 0.0
    %271 = vmatpush1.msra.mxu0 0.0
    %272 = vmatprep.subr.mxu0 0.0
    %273 = vmatpush1.msra.mxu0 0.0
    %274 = vmatprep.subr.mxu0 0.0
    %275 = vmatpush1.msra.mxu0 0.0
    %276 = vmatprep.subr.mxu0 0.0
    %277 = vmatpush1.msra.mxu0 0.0
    %278 = vmatprep.subr.mxu0 0.0
    %279 = vmatpush1.msra.mxu0 0.0
    %280 = vmatprep.subr.mxu0 0.0
    %281 = vmatpush1.msra.mxu0 0.0
    %282 = vmatprep.subr.mxu0 0.0
    %283 = vmatpush1.msra.mxu0 0.0
    %284 = vmatprep.subr.mxu0 0.0
    %285 = vmatpush1.msra.mxu0 0.0
    %286 = vmatprep.subr.mxu0 0.0
    %287 = vmatpush1.msra.mxu0 0.0
    %288 = vmatprep.subr.mxu0 0.0
    %289 = vmatpush1.msra.mxu0 0.0
    %290 = vmatprep.subr.mxu0 0.0
    %291 = vmatpush1.msra.mxu0 0.0
    %292 = vmatprep.subr.mxu0 0.0
    %293 = vmatpush1.msra.mxu0 0.0
    %294 = vmatprep.subr.mxu0 0.0
    %295 = vmatpush1.msra.mxu0 0.0
    %296 = vmatprep.subr.mxu0 0.0
    %297 = vmatpush1.msra.mxu0 0.0
    %298 = vmatprep.subr.mxu0 0.0
    %299 = vmatpush1.msra.mxu0 0.0
    %300 = vmatprep.subr.mxu0 0.0
    %301 = vmatpush1.msra.mxu0 0.0
    %302 = vmatprep.subr.mxu0 0.0
    %303 = vmatpush1.msra.mxu0 0.0
    %304 = vmatprep.subr.mxu0 0.0
    %305 = vmatpush1.msra.mxu0 0.0
    %306 = vmatprep.subr.mxu0 0.0
    %307 = vmatpush1.msra.mxu0 0.0
    %308 = vmatprep.subr.mxu0 0.0
    %309 = vmatpush1.msra.mxu0 0.0
    %310 = vmatprep.subr.mxu0 0.0
    %311 = vmatpush1.msra.mxu0 0.0
    %312 = vmatprep.subr.mxu0 0.0
    %313 = vmatpush1.msra.mxu0 0.0
    %314 = vmatprep.subr.mxu0 0.0
    %315 = vmatpush1.msra.mxu0 0.0
    %316 = vmatprep.subr.mxu0 0.0
    %317 = vmatpush1.msra.mxu0 0.0
    %318 = vmatprep.subr.mxu0 0.0
    %319 = vmatpush1.msra.mxu0 0.0
    %320 = vmatprep.mubr.f32.mxu0 0.0
    %321 = vmatmul.mubr.f32.gmra.mrb[0].mxu0 %v254
    %v322 = vpop.f32.mrb[0].mxu0
    %v323 = vadd.f32 %v151, %v322
    %v324 = vpop.f32.mrb[0].mxu0
    %325 = vdwg.mxu0
    %v326 = vxor.u32 %v323, 2147483648
    %v327 = vmul.f32 %v326, 1.442695
    %v328 = vpow.pop %v327
    %v329 = vadd.f32 %v328, 1.0
    %v330 = vrcp.pop %v329
    %v331 = vmul.f32 1.0, %v330
    %v332 = vtanh.pop %v323
    %v333 = vmul.f32 %v331, %v244
    %335 = vrot.lane.b32.xlu0 %v332, 32
    %v336 = vpop.permute.xlu0 %335
    %v338 = vmul.f32 %v331, %v336
    %340 = vrot.lane.b32.xlu0 %v338, 32
    %v341 = vpop.permute.xlu0 %340
    %v343 = vadd.f32 %v333, %v341
    %v344 = vtanh.pop %v343
    %346 = vrot.lane.b32.xlu0 %v344, 32
    %v347 = vpop.permute.xlu0 %346
    %v349 = vmul.f32 %v331, %v347
    %351 = vrot.lane.b32.xlu0 %v349, 64
    %v352 = vpop.permute.xlu0 %351
    %v353 = vsel %vm153, %v352, 0
    %355 = vmatprep.subr.mxu0 0.0
    %356 = vmatpush1.msra.mxu0 %v53
    %357 = vmatprep.subr.mxu0 0.0
    %358 = vmatpush1.msra.mxu0 %v54
    %359 = vmatprep.subr.mxu0 0.0
    %360 = vmatpush1.msra.mxu0 %v55
    %361 = vmatprep.subr.mxu0 0.0
    %362 = vmatpush1.msra.mxu0 %v56
    %363 = vmatprep.subr.mxu0 0.0
    %364 = vmatpush1.msra.mxu0 0.0
    %365 = vmatprep.subr.mxu0 0.0
    %366 = vmatpush1.msra.mxu0 0.0
    %367 = vmatprep.subr.mxu0 0.0
    %368 = vmatpush1.msra.mxu0 0.0
    %369 = vmatprep.subr.mxu0 0.0
    %370 = vmatpush1.msra.mxu0 0.0
    %371 = vmatprep.subr.mxu0 0.0
    %372 = vmatpush1.msra.mxu0 0.0
    %373 = vmatprep.subr.mxu0 0.0
    %374 = vmatpush1.msra.mxu0 0.0
    %375 = vmatprep.subr.mxu0 0.0
    %376 = vmatpush1.msra.mxu0 0.0
    %377 = vmatprep.subr.mxu0 0.0
    %378 = vmatpush1.msra.mxu0 0.0
    %379 = vmatprep.subr.mxu0 0.0
    %380 = vmatpush1.msra.mxu0 0.0
    %381 = vmatprep.subr.mxu0 0.0
    %382 = vmatpush1.msra.mxu0 0.0
    %383 = vmatprep.subr.mxu0 0.0
    %384 = vmatpush1.msra.mxu0 0.0
    %385 = vmatprep.subr.mxu0 0.0
    %386 = vmatpush1.msra.mxu0 0.0
    %387 = vmatprep.subr.mxu0 0.0
    %388 = vmatpush1.msra.mxu0 0.0
    %389 = vmatprep.subr.mxu0 0.0
    %390 = vmatpush1.msra.mxu0 0.0
    %391 = vmatprep.subr.mxu0 0.0
    %392 = vmatpush1.msra.mxu0 0.0
    %393 = vmatprep.subr.mxu0 0.0
    %394 = vmatpush1.msra.mxu0 0.0
    %395 = vmatprep.subr.mxu0 0.0
    %396 = vmatpush1.msra.mxu0 0.0
    %397 = vmatprep.subr.mxu0 0.0
    %398 = vmatpush1.msra.mxu0 0.0
    %399 = vmatprep.subr.mxu0 0.0
    %400 = vmatpush1.msra.mxu0 0.0
    %401 = vmatprep.subr.mxu0 0.0
    %402 = vmatpush1.msra.mxu0 0.0
    %403 = vmatprep.subr.mxu0 0.0
    %404 = vmatpush1.msra.mxu0 0.0
    %405 = vmatprep.subr.mxu0 0.0
    %406 = vmatpush1.msra.mxu0 0.0
    %407 = vmatprep.subr.mxu0 0.0
    %408 = vmatpush1.msra.mxu0 0.0
    %409 = vmatprep.subr.mxu0 0.0
    %410 = vmatpush1.msra.mxu0 0.0
    %411 = vmatprep.subr.mxu0 0.0
    %412 = vmatpush1.msra.mxu0 0.0
    %413 = vmatprep.subr.mxu0 0.0
    %414 = vmatpush1.msra.mxu0 0.0
    %415 = vmatprep.subr.mxu0 0.0
    %416 = vmatpush1.msra.mxu0 0.0
    %417 = vmatprep.subr.mxu0 0.0
    %418 = vmatpush1.msra.mxu0 0.0
    %419 = vmatprep.mubr.f32.mxu0 0.0
    %420 = vmatmul.mubr.f32.gmra.mrb[0].mxu0 %v353
    %v421 = vpop.f32.mrb[0].mxu0
    %v422 = vadd.f32 %v151, %v421
    %v423 = vpop.f32.mrb[0].mxu0
    %424 = vdwg.mxu0
    %v425 = vxor.u32 %v422, 2147483648
    %v426 = vmul.f32 %v425, 1.442695
    %v427 = vpow.pop %v426
    %v428 = vadd.f32 %v427, 1.0
    %v429 = vrcp.pop %v428
    %v430 = vmul.f32 1.0, %v429
    %v431 = vtanh.pop %v422
    %v432 = vmul.f32 %v430, %v343
    %434 = vrot.lane.b32.xlu0 %v431, 32
    %v435 = vpop.permute.xlu0 %434
    %v437 = vmul.f32 %v430, %v435
    %439 = vrot.lane.b32.xlu0 %v437, 32
    %v440 = vpop.permute.xlu0 %439
    %v442 = vadd.f32 %v432, %v440
    %v443 = vtanh.pop %v442
    %445 = vrot.lane.b32.xlu0 %v443, 32
    %v446 = vpop.permute.xlu0 %445
    %v448 = vmul.f32 %v430, %v446
    %450 = vrot.lane.b32.xlu0 %v448, 64
    %v451 = vpop.permute.xlu0 %450
    %v452 = vsel %vm153, %v451, 0
    %454 = vmatprep.subr.mxu0 0.0
    %455 = vmatpush1.msra.mxu0 %v53
    %456 = vmatprep.subr.mxu0 0.0
    %457 = vmatpush1.msra.mxu0 %v54
    %458 = vmatprep.subr.mxu0 0.0
    %459 = vmatpush1.msra.mxu0 %v55
    %460 = vmatprep.subr.mxu0 0.0
    %461 = vmatpush1.msra.mxu0 %v56
    %462 = vmatprep.subr.mxu0 0.0
    %463 = vmatpush1.msra.mxu0 0.0
    %464 = vmatprep.subr.mxu0 0.0
    %465 = vmatpush1.msra.mxu0 0.0
    %466 = vmatprep.subr.mxu0 0.0
    %467 = vmatpush1.msra.mxu0 0.0
    %468 = vmatprep.subr.mxu0 0.0
    %469 = vmatpush1.msra.mxu0 0.0
    %470 = vmatprep.subr.mxu0 0.0
    %471 = vmatpush1.msra.mxu0 0.0
    %472 = vmatprep.subr.mxu0 0.0
    %473 = vmatpush1.msra.mxu0 0.0
    %474 = vmatprep.subr.mxu0 0.0
    %475 = vmatpush1.msra.mxu0 0.0
    %476 = vmatprep.subr.mxu0 0.0
    %477 = vmatpush1.msra.mxu0 0.0
    %478 = vmatprep.subr.mxu0 0.0
    %479 = vmatpush1.msra.mxu0 0.0
    %480 = vmatprep.subr.mxu0 0.0
    %481 = vmatpush1.msra.mxu0 0.0
    %482 = vmatprep.subr.mxu0 0.0
    %483 = vmatpush1.msra.mxu0 0.0
    %484 = vmatprep.subr.mxu0 0.0
    %485 = vmatpush1.msra.mxu0 0.0
    %486 = vmatprep.subr.mxu0 0.0
    %487 = vmatpush1.msra.mxu0 0.0
    %488 = vmatprep.subr.mxu0 0.0
    %489 = vmatpush1.msra.mxu0 0.0
    %490 = vmatprep.subr.mxu0 0.0
    %491 = vmatpush1.msra.mxu0 0.0
    %492 = vmatprep.subr.mxu0 0.0
    %493 = vmatpush1.msra.mxu0 0.0
    %494 = vmatprep.subr.mxu0 0.0
    %495 = vmatpush1.msra.mxu0 0.0
    %496 = vmatprep.subr.mxu0 0.0
    %497 = vmatpush1.msra.mxu0 0.0
    %498 = vmatprep.subr.mxu0 0.0
    %499 = vmatpush1.msra.mxu0 0.0
    %500 = vmatprep.subr.mxu0 0.0
    %501 = vmatpush1.msra.mxu0 0.0
    %502 = vmatprep.subr.mxu0 0.0
    %503 = vmatpush1.msra.mxu0 0.0
    %504 = vmatprep.subr.mxu0 0.0
    %505 = vmatpush1.msra.mxu0 0.0
    %506 = vmatprep.subr.mxu0 0.0
    %507 = vmatpush1.msra.mxu0 0.0
    %508 = vmatprep.subr.mxu0 0.0
    %509 = vmatpush1.msra.mxu0 0.0
    %510 = vmatprep.subr.mxu0 0.0
    %511 = vmatpush1.msra.mxu0 0.0
    %512 = vmatprep.subr.mxu0 0.0
    %513 = vmatpush1.msra.mxu0 0.0
    %514 = vmatprep.subr.mxu0 0.0
    %515 = vmatpush1.msra.mxu0 0.0
    %516 = vmatprep.subr.mxu0 0.0
    %517 = vmatpush1.msra.mxu0 0.0
    %518 = vmatprep.mubr.f32.mxu0 0.0
    %519 = vmatmul.mubr.f32.gmra.mrb[0].mxu0 %v452
    %v520 = vpop.f32.mrb[0].mxu0
    %v521 = vadd.f32 %v151, %v520
    %v522 = vpop.f32.mrb[0].mxu0
    %523 = vdwg.mxu0
    %v524 = vxor.u32 %v521, 2147483648
    %v525 = vmul.f32 %v524, 1.442695
    %v526 = vpow.pop %v525
    %v527 = vadd.f32 %v526, 1.0
    %v528 = vrcp.pop %v527
    %v529 = vmul.f32 1.0, %v528
    %v530 = vtanh.pop %v521
    %v531 = vmul.f32 %v529, %v442
    %533 = vrot.lane.b32.xlu0 %v530, 32
    %v534 = vpop.permute.xlu0 %533
    %v536 = vmul.f32 %v529, %v534
    %538 = vrot.lane.b32.xlu0 %v536, 32
    %v539 = vpop.permute.xlu0 %538
    %v541 = vadd.f32 %v531, %v539
    %v542 = vtanh.pop %v541
    %544 = vrot.lane.b32.xlu0 %v542, 32
    %v545 = vpop.permute.xlu0 %544
    %v547 = vmul.f32 %v529, %v545
    %549 = vrot.lane.b32.xlu0 %v547, 64
    %v550 = vpop.permute.xlu0 %549
    %v551 = vsel %vm153, %v550, 0
    %553 = vmatprep.subr.mxu0 0.0
    %554 = vmatpush1.msra.mxu0 %v53
    %555 = vmatprep.subr.mxu0 0.0
    %556 = vmatpush1.msra.mxu0 %v54
    %557 = vmatprep.subr.mxu0 0.0
    %558 = vmatpush1.msra.mxu0 %v55
    %559 = vmatprep.subr.mxu0 0.0
    %560 = vmatpush1.msra.mxu0 %v56
    %561 = vmatprep.subr.mxu0 0.0
    %562 = vmatpush1.msra.mxu0 0.0
    %563 = vmatprep.subr.mxu0 0.0
    %564 = vmatpush1.msra.mxu0 0.0
    %565 = vmatprep.subr.mxu0 0.0
    %566 = vmatpush1.msra.mxu0 0.0
    %567 = vmatprep.subr.mxu0 0.0
    %568 = vmatpush1.msra.mxu0 0.0
    %569 = vmatprep.subr.mxu0 0.0
    %570 = vmatpush1.msra.mxu0 0.0
    %571 = vmatprep.subr.mxu0 0.0
    %572 = vmatpush1.msra.mxu0 0.0
    %573 = vmatprep.subr.mxu0 0.0
    %574 = vmatpush1.msra.mxu0 0.0
    %575 = vmatprep.subr.mxu0 0.0
    %576 = vmatpush1.msra.mxu0 0.0
    %577 = vmatprep.subr.mxu0 0.0
    %578 = vmatpush1.msra.mxu0 0.0
    %579 = vmatprep.subr.mxu0 0.0
    %580 = vmatpush1.msra.mxu0 0.0
    %581 = vmatprep.subr.mxu0 0.0
    %582 = vmatpush1.msra.mxu0 0.0
    %583 = vmatprep.subr.mxu0 0.0
    %584 = vmatpush1.msra.mxu0 0.0
    %585 = vmatprep.subr.mxu0 0.0
    %586 = vmatpush1.msra.mxu0 0.0
    %587 = vmatprep.subr.mxu0 0.0
    %588 = vmatpush1.msra.mxu0 0.0
    %589 = vmatprep.subr.mxu0 0.0
    %590 = vmatpush1.msra.mxu0 0.0
    %591 = vmatprep.subr.mxu0 0.0
    %592 = vmatpush1.msra.mxu0 0.0
    %593 = vmatprep.subr.mxu0 0.0
    %594 = vmatpush1.msra.mxu0 0.0
    %595 = vmatprep.subr.mxu0 0.0
    %596 = vmatpush1.msra.mxu0 0.0
    %597 = vmatprep.subr.mxu0 0.0
    %598 = vmatpush1.msra.mxu0 0.0
    %599 = vmatprep.subr.mxu0 0.0
    %600 = vmatpush1.msra.mxu0 0.0
    %601 = vmatprep.subr.mxu0 0.0
    %602 = vmatpush1.msra.mxu0 0.0
    %603 = vmatprep.subr.mxu0 0.0
    %604 = vmatpush1.msra.mxu0 0.0
    %605 = vmatprep.subr.mxu0 0.0
    %606 = vmatpush1.msra.mxu0 0.0
    %607 = vmatprep.subr.mxu0 0.0
    %608 = vmatpush1.msra.mxu0 0.0
    %609 = vmatprep.subr.mxu0 0.0
    %610 = vmatpush1.msra.mxu0 0.0
    %611 = vmatprep.subr.mxu0 0.0
    %612 = vmatpush1.msra.mxu0 0.0
    %613 = vmatprep.subr.mxu0 0.0
    %614 = vmatpush1.msra.mxu0 0.0
    %615 = vmatprep.subr.mxu0 0.0
    %616 = vmatpush1.msra.mxu0 0.0
    %617 = vmatprep.mubr.f32.mxu0 0.0
    %618 = vmatmul.mubr.f32.gmra.mrb[0].mxu0 %v551
    %v619 = vpop.f32.mrb[0].mxu0
    %v620 = vadd.f32 %v151, %v619
    %v621 = vpop.f32.mrb[0].mxu0
    %622 = vdwg.mxu0
    %v623 = vxor.u32 %v620, 2147483648
    %v624 = vmul.f32 %v623, 1.442695
    %v625 = vpow.pop %v624
    %v626 = vadd.f32 %v625, 1.0
    %v627 = vrcp.pop %v626
    %v628 = vmul.f32 1.0, %v627
    %v629 = vtanh.pop %v620
    %v630 = vmul.f32 %v628, %v541
    %632 = vrot.lane.b32.xlu0 %v629, 32
    %v633 = vpop.permute.xlu0 %632
    %v635 = vmul.f32 %v628, %v633
    %637 = vrot.lane.b32.xlu0 %v635, 32
    %v638 = vpop.permute.xlu0 %637
    %v640 = vadd.f32 %v630, %v638
    %v641 = vtanh.pop %v640
    %643 = vrot.lane.b32.xlu0 %v641, 32
    %v644 = vpop.permute.xlu0 %643
    %v646 = vmul.f32 %v628, %v644
    %648 = vrot.lane.b32.xlu0 %v646, 64
    %v649 = vpop.permute.xlu0 %648
    %v650 = vsel %vm153, %v649, 0
    %652 = vmatprep.subr.mxu0 0.0
    %653 = vmatpush1.msra.mxu0 %v53
    %654 = vmatprep.subr.mxu0 0.0
    %655 = vmatpush1.msra.mxu0 %v54
    %656 = vmatprep.subr.mxu0 0.0
    %657 = vmatpush1.msra.mxu0 %v55
    %658 = vmatprep.subr.mxu0 0.0
    %659 = vmatpush1.msra.mxu0 %v56
    %660 = vmatprep.subr.mxu0 0.0
    %661 = vmatpush1.msra.mxu0 0.0
    %662 = vmatprep.subr.mxu0 0.0
    %663 = vmatpush1.msra.mxu0 0.0
    %664 = vmatprep.subr.mxu0 0.0
    %665 = vmatpush1.msra.mxu0 0.0
    %666 = vmatprep.subr.mxu0 0.0
    %667 = vmatpush1.msra.mxu0 0.0
    %668 = vmatprep.subr.mxu0 0.0
    %669 = vmatpush1.msra.mxu0 0.0
    %670 = vmatprep.subr.mxu0 0.0
    %671 = vmatpush1.msra.mxu0 0.0
    %672 = vmatprep.subr.mxu0 0.0
    %673 = vmatpush1.msra.mxu0 0.0
    %674 = vmatprep.subr.mxu0 0.0
    %675 = vmatpush1.msra.mxu0 0.0
    %676 = vmatprep.subr.mxu0 0.0
    %677 = vmatpush1.msra.mxu0 0.0
    %678 = vmatprep.subr.mxu0 0.0
    %679 = vmatpush1.msra.mxu0 0.0
    %680 = vmatprep.subr.mxu0 0.0
    %681 = vmatpush1.msra.mxu0 0.0
    %682 = vmatprep.subr.mxu0 0.0
    %683 = vmatpush1.msra.mxu0 0.0
    %684 = vmatprep.subr.mxu0 0.0
    %685 = vmatpush1.msra.mxu0 0.0
    %686 = vmatprep.subr.mxu0 0.0
    %687 = vmatpush1.msra.mxu0 0.0
    %688 = vmatprep.subr.mxu0 0.0
    %689 = vmatpush1.msra.mxu0 0.0
    %690 = vmatprep.subr.mxu0 0.0
    %691 = vmatpush1.msra.mxu0 0.0
    %692 = vmatprep.subr.mxu0 0.0
    %693 = vmatpush1.msra.mxu0 0.0
    %694 = vmatprep.subr.mxu0 0.0
    %695 = vmatpush1.msra.mxu0 0.0
    %696 = vmatprep.subr.mxu0 0.0
    %697 = vmatpush1.msra.mxu0 0.0
    %698 = vmatprep.subr.mxu0 0.0
    %699 = vmatpush1.msra.mxu0 0.0
    %700 = vmatprep.subr.mxu0 0.0
    %701 = vmatpush1.msra.mxu0 0.0
    %702 = vmatprep.subr.mxu0 0.0
    %703 = vmatpush1.msra.mxu0 0.0
    %704 = vmatprep.subr.mxu0 0.0
    %705 = vmatpush1.msra.mxu0 0.0
    %706 = vmatprep.subr.mxu0 0.0
    %707 = vmatpush1.msra.mxu0 0.0
    %708 = vmatprep.subr.mxu0 0.0
    %709 = vmatpush1.msra.mxu0 0.0
    %710 = vmatprep.subr.mxu0 0.0
    %711 = vmatpush1.msra.mxu0 0.0
    %712 = vmatprep.subr.mxu0 0.0
    %713 = vmatpush1.msra.mxu0 0.0
    %714 = vmatprep.subr.mxu0 0.0
    %715 = vmatpush1.msra.mxu0 0.0
    %716 = vmatprep.mubr.f32.mxu0 0.0
    %717 = vmatmul.mubr.f32.gmra.mrb[0].mxu0 %v650
    %v718 = vpop.f32.mrb[0].mxu0
    %v719 = vadd.f32 %v151, %v718
    %v720 = vpop.f32.mrb[0].mxu0
    %721 = vdwg.mxu0
    %v722 = vxor.u32 %v719, 2147483648
    %v723 = vmul.f32 %v722, 1.442695
    %v724 = vpow.pop %v723
    %v725 = vadd.f32 %v724, 1.0
    %v726 = vrcp.pop %v725
    %v727 = vmul.f32 1.0, %v726
    %v728 = vtanh.pop %v719
    %v729 = vmul.f32 %v727, %v640
    %731 = vrot.lane.b32.xlu0 %v728, 32
    %v732 = vpop.permute.xlu0 %731
    %v734 = vmul.f32 %v727, %v732
    %736 = vrot.lane.b32.xlu0 %v734, 32
    %v737 = vpop.permute.xlu0 %736
    %v739 = vadd.f32 %v729, %v737
    %v740 = vtanh.pop %v739
    %742 = vrot.lane.b32.xlu0 %v740, 32
    %v743 = vpop.permute.xlu0 %742
    %v745 = vmul.f32 %v727, %v743
    %747 = vrot.lane.b32.xlu0 %v745, 64
    %v748 = vpop.permute.xlu0 %747
    %v749 = vsel %vm153, %v748, 0
    %751 = vmatprep.subr.mxu0 0.0
    %752 = vmatpush1.msra.mxu0 %v53
    %753 = vmatprep.subr.mxu0 0.0
    %754 = vmatpush1.msra.mxu0 %v54
    %755 = vmatprep.subr.mxu0 0.0
    %756 = vmatpush1.msra.mxu0 %v55
    %757 = vmatprep.subr.mxu0 0.0
    %758 = vmatpush1.msra.mxu0 %v56
    %759 = vmatprep.subr.mxu0 0.0
    %760 = vmatpush1.msra.mxu0 0.0
    %761 = vmatprep.subr.mxu0 0.0
    %762 = vmatpush1.msra.mxu0 0.0
    %763 = vmatprep.subr.mxu0 0.0
    %764 = vmatpush1.msra.mxu0 0.0
    %765 = vmatprep.subr.mxu0 0.0
    %766 = vmatpush1.msra.mxu0 0.0
    %767 = vmatprep.subr.mxu0 0.0
    %768 = vmatpush1.msra.mxu0 0.0
    %769 = vmatprep.subr.mxu0 0.0
    %770 = vmatpush1.msra.mxu0 0.0
    %771 = vmatprep.subr.mxu0 0.0
    %772 = vmatpush1.msra.mxu0 0.0
    %773 = vmatprep.subr.mxu0 0.0
    %774 = vmatpush1.msra.mxu0 0.0
    %775 = vmatprep.subr.mxu0 0.0
    %776 = vmatpush1.msra.mxu0 0.0
    %777 = vmatprep.subr.mxu0 0.0
    %778 = vmatpush1.msra.mxu0 0.0
    %779 = vmatprep.subr.mxu0 0.0
    %780 = vmatpush1.msra.mxu0 0.0
    %781 = vmatprep.subr.mxu0 0.0
    %782 = vmatpush1.msra.mxu0 0.0
    %783 = vmatprep.subr.mxu0 0.0
    %784 = vmatpush1.msra.mxu0 0.0
    %785 = vmatprep.subr.mxu0 0.0
    %786 = vmatpush1.msra.mxu0 0.0
    %787 = vmatprep.subr.mxu0 0.0
    %788 = vmatpush1.msra.mxu0 0.0
    %789 = vmatprep.subr.mxu0 0.0
    %790 = vmatpush1.msra.mxu0 0.0
    %791 = vmatprep.subr.mxu0 0.0
    %792 = vmatpush1.msra.mxu0 0.0
    %793 = vmatprep.subr.mxu0 0.0
    %794 = vmatpush1.msra.mxu0 0.0
    %795 = vmatprep.subr.mxu0 0.0
    %796 = vmatpush1.msra.mxu0 0.0
    %797 = vmatprep.subr.mxu0 0.0
    %798 = vmatpush1.msra.mxu0 0.0
    %799 = vmatprep.subr.mxu0 0.0
    %800 = vmatpush1.msra.mxu0 0.0
    %801 = vmatprep.subr.mxu0 0.0
    %802 = vmatpush1.msra.mxu0 0.0
    %803 = vmatprep.subr.mxu0 0.0
    %804 = vmatpush1.msra.mxu0 0.0
    %805 = vmatprep.subr.mxu0 0.0
    %806 = vmatpush1.msra.mxu0 0.0
    %807 = vmatprep.subr.mxu0 0.0
    %808 = vmatpush1.msra.mxu0 0.0
    %809 = vmatprep.subr.mxu0 0.0
    %810 = vmatpush1.msra.mxu0 0.0
    %811 = vmatprep.subr.mxu0 0.0
    %812 = vmatpush1.msra.mxu0 0.0
    %813 = vmatprep.subr.mxu0 0.0
    %814 = vmatpush1.msra.mxu0 0.0
    %815 = vmatprep.mubr.f32.mxu0 0.0
    %816 = vmatmul.mubr.f32.gmra.mrb[0].mxu0 %v749
    %v817 = vpop.f32.mrb[0].mxu0
    %v818 = vadd.f32 %v151, %v817
    %v819 = vpop.f32.mrb[0].mxu0
    %820 = vdwg.mxu0
    %v821 = vxor.u32 %v818, 2147483648
    %v822 = vmul.f32 %v821, 1.442695
    %v823 = vpow.pop %v822
    %v824 = vadd.f32 %v823, 1.0
    %v825 = vrcp.pop %v824
    %v826 = vmul.f32 1.0, %v825
    %v827 = vtanh.pop %v818
    %v828 = vmul.f32 %v826, %v739
    %830 = vrot.lane.b32.xlu0 %v827, 32
    %v831 = vpop.permute.xlu0 %830
    %v833 = vmul.f32 %v826, %v831
    %835 = vrot.lane.b32.xlu0 %v833, 32
    %v836 = vpop.permute.xlu0 %835
    %v838 = vadd.f32 %v828, %v836
    %v839 = vtanh.pop %v838
    %841 = vrot.lane.b32.xlu0 %v839, 32
    %v842 = vpop.permute.xlu0 %841
    %v844 = vmul.f32 %v826, %v842
    %846 = vrot.lane.b32.xlu0 %v844, 64
    %v847 = vpop.permute.xlu0 %846
    %v848 = vsel %vm153, %v847, 0
    %850 = vmatprep.subr.mxu0 0.0
    %851 = vmatpush1.msra.mxu0 %v53
    %852 = vmatprep.subr.mxu0 0.0
    %853 = vmatpush1.msra.mxu0 %v54
    %854 = vmatprep.subr.mxu0 0.0
    %855 = vmatpush1.msra.mxu0 %v55
    %856 = vmatprep.subr.mxu0 0.0
    %857 = vmatpush1.msra.mxu0 %v56
    %858 = vmatprep.subr.mxu0 0.0
    %859 = vmatpush1.msra.mxu0 0.0
    %860 = vmatprep.subr.mxu0 0.0
    %861 = vmatpush1.msra.mxu0 0.0
    %862 = vmatprep.subr.mxu0 0.0
    %863 = vmatpush1.msra.mxu0 0.0
    %864 = vmatprep.subr.mxu0 0.0
    %865 = vmatpush1.msra.mxu0 0.0
    %866 = vmatprep.subr.mxu0 0.0
    %867 = vmatpush1.msra.mxu0 0.0
    %868 = vmatprep.subr.mxu0 0.0
    %869 = vmatpush1.msra.mxu0 0.0
    %870 = vmatprep.subr.mxu0 0.0
    %871 = vmatpush1.msra.mxu0 0.0
    %872 = vmatprep.subr.mxu0 0.0
    %873 = vmatpush1.msra.mxu0 0.0
    %874 = vmatprep.subr.mxu0 0.0
    %875 = vmatpush1.msra.mxu0 0.0
    %876 = vmatprep.subr.mxu0 0.0
    %877 = vmatpush1.msra.mxu0 0.0
    %878 = vmatprep.subr.mxu0 0.0
    %879 = vmatpush1.msra.mxu0 0.0
    %880 = vmatprep.subr.mxu0 0.0
    %881 = vmatpush1.msra.mxu0 0.0
    %882 = vmatprep.subr.mxu0 0.0
    %883 = vmatpush1.msra.mxu0 0.0
    %884 = vmatprep.subr.mxu0 0.0
    %885 = vmatpush1.msra.mxu0 0.0
    %886 = vmatprep.subr.mxu0 0.0
    %887 = vmatpush1.msra.mxu0 0.0
    %888 = vmatprep.subr.mxu0 0.0
    %889 = vmatpush1.msra.mxu0 0.0
    %890 = vmatprep.subr.mxu0 0.0
    %891 = vmatpush1.msra.mxu0 0.0
    %892 = vmatprep.subr.mxu0 0.0
    %893 = vmatpush1.msra.mxu0 0.0
    %894 = vmatprep.subr.mxu0 0.0
    %895 = vmatpush1.msra.mxu0 0.0
    %896 = vmatprep.subr.mxu0 0.0
    %897 = vmatpush1.msra.mxu0 0.0
    %898 = vmatprep.subr.mxu0 0.0
    %899 = vmatpush1.msra.mxu0 0.0
    %900 = vmatprep.subr.mxu0 0.0
    %901 = vmatpush1.msra.mxu0 0.0
    %902 = vmatprep.subr.mxu0 0.0
    %903 = vmatpush1.msra.mxu0 0.0
    %904 = vmatprep.subr.mxu0 0.0
    %905 = vmatpush1.msra.mxu0 0.0
    %906 = vmatprep.subr.mxu0 0.0
    %907 = vmatpush1.msra.mxu0 0.0
    %908 = vmatprep.subr.mxu0 0.0
    %909 = vmatpush1.msra.mxu0 0.0
    %910 = vmatprep.subr.mxu0 0.0
    %911 = vmatpush1.msra.mxu0 0.0
    %912 = vmatprep.subr.mxu0 0.0
    %913 = vmatpush1.msra.mxu0 0.0
    %914 = vmatprep.mubr.f32.mxu0 0.0
    %915 = vmatmul.mubr.f32.gmra.mrb[0].mxu0 %v848
    %v916 = vpop.f32.mrb[0].mxu0
    %v917 = vadd.f32 %v151, %v916
    %v918 = vpop.f32.mrb[0].mxu0
    %919 = vdwg.mxu0
    %v920 = vxor.u32 %v917, 2147483648
    %v921 = vmul.f32 %v920, 1.442695
    %v922 = vpow.pop %v921
    %v923 = vadd.f32 %v922, 1.0
    %v924 = vrcp.pop %v923
    %v925 = vmul.f32 1.0, %v924
    %v926 = vtanh.pop %v917
    %v927 = vmul.f32 %v925, %v838
    %929 = vrot.lane.b32.xlu0 %v926, 32
    %v930 = vpop.permute.xlu0 %929
    %v932 = vmul.f32 %v925, %v930
    %934 = vrot.lane.b32.xlu0 %v932, 32
    %v935 = vpop.permute.xlu0 %934
    %v937 = vadd.f32 %v927, %v935
    %v938 = vtanh.pop %v937
    %940 = vrot.lane.b32.xlu0 %v938, 32
    %v941 = vpop.permute.xlu0 %940
    %v943 = vmul.f32 %v925, %v941
    %v944 = vlaneseq
    %v945 = vand.u32 %v944, 127
    %946 = vmatprep.subr.mxu0 0.0
    %947 = vmatpush1.msra.mxu0 %v58
    %948 = vmatprep.subr.mxu0 0.0
    %949 = vmatpush1.msra.mxu0 %v59
    %950 = vmatprep.subr.mxu0 0.0
    %951 = vmatpush1.msra.mxu0 %v60
    %952 = vmatprep.subr.mxu0 0.0
    %953 = vmatpush1.msra.mxu0 %v61
    %954 = vmatprep.subr.mxu0 0.0
    %955 = vmatpush1.msra.mxu0 0.0
    %956 = vmatprep.subr.mxu0 0.0
    %957 = vmatpush1.msra.mxu0 0.0
    %958 = vmatprep.subr.mxu0 0.0
    %959 = vmatpush1.msra.mxu0 0.0
    %960 = vmatprep.subr.mxu0 0.0
    %961 = vmatpush1.msra.mxu0 0.0
    %962 = vmatprep.subr.mxu0 0.0
    %963 = vmatpush1.msra.mxu0 0.0
    %964 = vmatprep.subr.mxu0 0.0
    %965 = vmatpush1.msra.mxu0 0.0
    %966 = vmatprep.subr.mxu0 0.0
    %967 = vmatpush1.msra.mxu0 0.0
    %968 = vmatprep.subr.mxu0 0.0
    %969 = vmatpush1.msra.mxu0 0.0
    %970 = vmatprep.subr.mxu0 0.0
    %971 = vmatpush1.msra.mxu0 0.0
    %972 = vmatprep.subr.mxu0 0.0
    %973 = vmatpush1.msra.mxu0 0.0
    %974 = vmatprep.subr.mxu0 0.0
    %975 = vmatpush1.msra.mxu0 0.0
    %976 = vmatprep.subr.mxu0 0.0
    %977 = vmatpush1.msra.mxu0 0.0
    %978 = vmatprep.subr.mxu0 0.0
    %979 = vmatpush1.msra.mxu0 0.0
    %980 = vmatprep.subr.mxu0 0.0
    %981 = vmatpush1.msra.mxu0 0.0
    %982 = vmatprep.subr.mxu0 0.0
    %983 = vmatpush1.msra.mxu0 0.0
    %984 = vmatprep.subr.mxu0 0.0
    %985 = vmatpush1.msra.mxu0 0.0
    %986 = vmatprep.subr.mxu0 0.0
    %987 = vmatpush1.msra.mxu0 0.0
    %988 = vmatprep.subr.mxu0 0.0
    %989 = vmatpush1.msra.mxu0 0.0
    %990 = vmatprep.subr.mxu0 0.0
    %991 = vmatpush1.msra.mxu0 0.0
    %992 = vmatprep.subr.mxu0 0.0
    %993 = vmatpush1.msra.mxu0 0.0
    %994 = vmatprep.subr.mxu0 0.0
    %995 = vmatpush1.msra.mxu0 0.0
    %996 = vmatprep.subr.mxu0 0.0
    %997 = vmatpush1.msra.mxu0 0.0
    %998 = vmatprep.subr.mxu0 0.0
    %999 = vmatpush1.msra.mxu0 0.0
    %1000 = vmatprep.subr.mxu0 0.0
    %1001 = vmatpush1.msra.mxu0 0.0
    %1002 = vmatprep.subr.mxu0 0.0
    %1003 = vmatpush1.msra.mxu0 0.0
    %1004 = vmatprep.subr.mxu0 0.0
    %1005 = vmatpush1.msra.mxu0 0.0
    %1006 = vmatprep.subr.mxu0 0.0
    %1007 = vmatpush1.msra.mxu0 0.0
    %1008 = vmatprep.subr.mxu0 0.0
    %1009 = vmatpush1.msra.mxu0 0.0
    %1010 = vmatprep.mubr.f32.mxu0 0.0
    %1011 = vmatmul.mubr.f32.gmra.mrb[0].mxu0 %v254
    %v1012 = vpop.f32.mrb[0].mxu0
    %v1013 = vadd.f32 0.0, %v1012
    %v1014 = vpop.f32.mrb[0].mxu0
    %1015 = vdwg.mxu0
    %vm1016 = vcmp.eq.s32.totalorder %v945, 0
    %1018 = vset.pattern.permute.xlu0 0
    %1019 = vperm.xlu0 %1018, %v1013
    %v1020 = vpop.permute.xlu0 %1019
    %v1022 = vsel %vm1016, %v1020, 0.0
    %1023 = vmatprep.subr.mxu0 0.0
    %1024 = vmatpush1.msra.mxu0 %v58
    %1025 = vmatprep.subr.mxu0 0.0
    %1026 = vmatpush1.msra.mxu0 %v59
    %1027 = vmatprep.subr.mxu0 0.0
    %1028 = vmatpush1.msra.mxu0 %v60
    %1029 = vmatprep.subr.mxu0 0.0
    %1030 = vmatpush1.msra.mxu0 %v61
    %1031 = vmatprep.subr.mxu0 0.0
    %1032 = vmatpush1.msra.mxu0 0.0
    %1033 = vmatprep.subr.mxu0 0.0
    %1034 = vmatpush1.msra.mxu0 0.0
    %1035 = vmatprep.subr.mxu0 0.0
    %1036 = vmatpush1.msra.mxu0 0.0
    %1037 = vmatprep.subr.mxu0 0.0
    %1038 = vmatpush1.msra.mxu0 0.0
    %1039 = vmatprep.subr.mxu0 0.0
    %1040 = vmatpush1.msra.mxu0 0.0
    %1041 = vmatprep.subr.mxu0 0.0
    %1042 = vmatpush1.msra.mxu0 0.0
    %1043 = vmatprep.subr.mxu0 0.0
    %1044 = vmatpush1.msra.mxu0 0.0
    %1045 = vmatprep.subr.mxu0 0.0
    %1046 = vmatpush1.msra.mxu0 0.0
    %1047 = vmatprep.subr.mxu0 0.0
    %1048 = vmatpush1.msra.mxu0 0.0
    %1049 = vmatprep.subr.mxu0 0.0
    %1050 = vmatpush1.msra.mxu0 0.0
    %1051 = vmatprep.subr.mxu0 0.0
    %1052 = vmatpush1.msra.mxu0 0.0
    %1053 = vmatprep.subr.mxu0 0.0
    %1054 = vmatpush1.msra.mxu0 0.0
    %1055 = vmatprep.subr.mxu0 0.0
    %1056 = vmatpush1.msra.mxu0 0.0
    %1057 = vmatprep.subr.mxu0 0.0
    %1058 = vmatpush1.msra.mxu0 0.0
    %1059 = vmatprep.subr.mxu0 0.0
    %1060 = vmatpush1.msra.mxu0 0.0
    %1061 = vmatprep.subr.mxu0 0.0
    %1062 = vmatpush1.msra.mxu0 0.0
    %1063 = vmatprep.subr.mxu0 0.0
    %1064 = vmatpush1.msra.mxu0 0.0
    %1065 = vmatprep.subr.mxu0 0.0
    %1066 = vmatpush1.msra.mxu0 0.0
    %1067 = vmatprep.subr.mxu0 0.0
    %1068 = vmatpush1.msra.mxu0 0.0
    %1069 = vmatprep.subr.mxu0 0.0
    %1070 = vmatpush1.msra.mxu0 0.0
    %1071 = vmatprep.subr.mxu0 0.0
    %1072 = vmatpush1.msra.mxu0 0.0
    %1073 = vmatprep.subr.mxu0 0.0
    %1074 = vmatpush1.msra.mxu0 0.0
    %1075 = vmatprep.subr.mxu0 0.0
    %1076 = vmatpush1.msra.mxu0 0.0
    %1077 = vmatprep.subr.mxu0 0.0
    %1078 = vmatpush1.msra.mxu0 0.0
    %1079 = vmatprep.subr.mxu0 0.0
    %1080 = vmatpush1.msra.mxu0 0.0
    %1081 = vmatprep.subr.mxu0 0.0
    %1082 = vmatpush1.msra.mxu0 0.0
    %1083 = vmatprep.subr.mxu0 0.0
    %1084 = vmatpush1.msra.mxu0 0.0
    %1085 = vmatprep.subr.mxu0 0.0
    %1086 = vmatpush1.msra.mxu0 0.0
    %1087 = vmatprep.mubr.f32.mxu0 0.0
    %1088 = vmatmul.mubr.f32.gmra.mrb[0].mxu0 %v353
    %v1089 = vpop.f32.mrb[0].mxu0
    %v1090 = vadd.f32 0.0, %v1089
    %v1091 = vpop.f32.mrb[0].mxu0
    %1092 = vdwg.mxu0
    %vm1093 = vcmp.eq.s32.totalorder %v945, 1
    %1095 = vset.pattern.permute.xlu0 0
    %1096 = vperm.xlu0 %1095, %v1090
    %v1097 = vpop.permute.xlu0 %1096
    %v1099 = vsel %vm1093, %v1097, %v1022
    %1100 = vmatprep.subr.mxu0 0.0
    %1101 = vmatpush1.msra.mxu0 %v58
    %1102 = vmatprep.subr.mxu0 0.0
    %1103 = vmatpush1.msra.mxu0 %v59
    %1104 = vmatprep.subr.mxu0 0.0
    %1105 = vmatpush1.msra.mxu0 %v60
    %1106 = vmatprep.subr.mxu0 0.0
    %1107 = vmatpush1.msra.mxu0 %v61
    %1108 = vmatprep.subr.mxu0 0.0
    %1109 = vmatpush1.msra.mxu0 0.0
    %1110 = vmatprep.subr.mxu0 0.0
    %1111 = vmatpush1.msra.mxu0 0.0
    %1112 = vmatprep.subr.mxu0 0.0
    %1113 = vmatpush1.msra.mxu0 0.0
    %1114 = vmatprep.subr.mxu0 0.0
    %1115 = vmatpush1.msra.mxu0 0.0
    %1116 = vmatprep.subr.mxu0 0.0
    %1117 = vmatpush1.msra.mxu0 0.0
    %1118 = vmatprep.subr.mxu0 0.0
    %1119 = vmatpush1.msra.mxu0 0.0
    %1120 = vmatprep.subr.mxu0 0.0
    %1121 = vmatpush1.msra.mxu0 0.0
    %1122 = vmatprep.subr.mxu0 0.0
    %1123 = vmatpush1.msra.mxu0 0.0
    %1124 = vmatprep.subr.mxu0 0.0
    %1125 = vmatpush1.msra.mxu0 0.0
    %1126 = vmatprep.subr.mxu0 0.0
    %1127 = vmatpush1.msra.mxu0 0.0
    %1128 = vmatprep.subr.mxu0 0.0
    %1129 = vmatpush1.msra.mxu0 0.0
    %1130 = vmatprep.subr.mxu0 0.0
    %1131 = vmatpush1.msra.mxu0 0.0
    %1132 = vmatprep.subr.mxu0 0.0
    %1133 = vmatpush1.msra.mxu0 0.0
    %1134 = vmatprep.subr.mxu0 0.0
    %1135 = vmatpush1.msra.mxu0 0.0
    %1136 = vmatprep.subr.mxu0 0.0
    %1137 = vmatpush1.msra.mxu0 0.0
    %1138 = vmatprep.subr.mxu0 0.0
    %1139 = vmatpush1.msra.mxu0 0.0
    %1140 = vmatprep.subr.mxu0 0.0
    %1141 = vmatpush1.msra.mxu0 0.0
    %1142 = vmatprep.subr.mxu0 0.0
    %1143 = vmatpush1.msra.mxu0 0.0
    %1144 = vmatprep.subr.mxu0 0.0
    %1145 = vmatpush1.msra.mxu0 0.0
    %1146 = vmatprep.subr.mxu0 0.0
    %1147 = vmatpush1.msra.mxu0 0.0
    %1148 = vmatprep.subr.mxu0 0.0
    %1149 = vmatpush1.msra.mxu0 0.0
    %1150 = vmatprep.subr.mxu0 0.0
    %1151 = vmatpush1.msra.mxu0 0.0
    %1152 = vmatprep.subr.mxu0 0.0
    %1153 = vmatpush1.msra.mxu0 0.0
    %1154 = vmatprep.subr.mxu0 0.0
    %1155 = vmatpush1.msra.mxu0 0.0
    %1156 = vmatprep.subr.mxu0 0.0
    %1157 = vmatpush1.msra.mxu0 0.0
    %1158 = vmatprep.subr.mxu0 0.0
    %1159 = vmatpush1.msra.mxu0 0.0
    %1160 = vmatprep.subr.mxu0 0.0
    %1161 = vmatpush1.msra.mxu0 0.0
    %1162 = vmatprep.subr.mxu0 0.0
    %1163 = vmatpush1.msra.mxu0 0.0
    %1164 = vmatprep.mubr.f32.mxu0 0.0
    %1165 = vmatmul.mubr.f32.gmra.mrb[0].mxu0 %v452
    %v1166 = vpop.f32.mrb[0].mxu0
    %v1167 = vadd.f32 0.0, %v1166
    %v1168 = vpop.f32.mrb[0].mxu0
    %1169 = vdwg.mxu0
    %vm1170 = vcmp.eq.s32.totalorder %v945, 2
    %1172 = vset.pattern.permute.xlu0 0
    %1173 = vperm.xlu0 %1172, %v1167
    %v1174 = vpop.permute.xlu0 %1173
    %v1176 = vsel %vm1170, %v1174, %v1099
    %1177 = vmatprep.subr.mxu0 0.0
    %1178 = vmatpush1.msra.mxu0 %v58
    %1179 = vmatprep.subr.mxu0 0.0
    %1180 = vmatpush1.msra.mxu0 %v59
    %1181 = vmatprep.subr.mxu0 0.0
    %1182 = vmatpush1.msra.mxu0 %v60
    %1183 = vmatprep.subr.mxu0 0.0
    %1184 = vmatpush1.msra.mxu0 %v61
    %1185 = vmatprep.subr.mxu0 0.0
    %1186 = vmatpush1.msra.mxu0 0.0
    %1187 = vmatprep.subr.mxu0 0.0
    %1188 = vmatpush1.msra.mxu0 0.0
    %1189 = vmatprep.subr.mxu0 0.0
    %1190 = vmatpush1.msra.mxu0 0.0
    %1191 = vmatprep.subr.mxu0 0.0
    %1192 = vmatpush1.msra.mxu0 0.0
    %1193 = vmatprep.subr.mxu0 0.0
    %1194 = vmatpush1.msra.mxu0 0.0
    %1195 = vmatprep.subr.mxu0 0.0
    %1196 = vmatpush1.msra.mxu0 0.0
    %1197 = vmatprep.subr.mxu0 0.0
    %1198 = vmatpush1.msra.mxu0 0.0
    %1199 = vmatprep.subr.mxu0 0.0
    %1200 = vmatpush1.msra.mxu0 0.0
    %1201 = vmatprep.subr.mxu0 0.0
    %1202 = vmatpush1.msra.mxu0 0.0
    %1203 = vmatprep.subr.mxu0 0.0
    %1204 = vmatpush1.msra.mxu0 0.0
    %1205 = vmatprep.subr.mxu0 0.0
    %1206 = vmatpush1.msra.mxu0 0.0
    %1207 = vmatprep.subr.mxu0 0.0
    %1208 = vmatpush1.msra.mxu0 0.0
    %1209 = vmatprep.subr.mxu0 0.0
    %1210 = vmatpush1.msra.mxu0 0.0
    %1211 = vmatprep.subr.mxu0 0.0
    %1212 = vmatpush1.msra.mxu0 0.0
    %1213 = vmatprep.subr.mxu0 0.0
    %1214 = vmatpush1.msra.mxu0 0.0
    %1215 = vmatprep.subr.mxu0 0.0
    %1216 = vmatpush1.msra.mxu0 0.0
    %1217 = vmatprep.subr.mxu0 0.0
    %1218 = vmatpush1.msra.mxu0 0.0
    %1219 = vmatprep.subr.mxu0 0.0
    %1220 = vmatpush1.msra.mxu0 0.0
    %1221 = vmatprep.subr.mxu0 0.0
    %1222 = vmatpush1.msra.mxu0 0.0
    %1223 = vmatprep.subr.mxu0 0.0
    %1224 = vmatpush1.msra.mxu0 0.0
    %1225 = vmatprep.subr.mxu0 0.0
    %1226 = vmatpush1.msra.mxu0 0.0
    %1227 = vmatprep.subr.mxu0 0.0
    %1228 = vmatpush1.msra.mxu0 0.0
    %1229 = vmatprep.subr.mxu0 0.0
    %1230 = vmatpush1.msra.mxu0 0.0
    %1231 = vmatprep.subr.mxu0 0.0
    %1232 = vmatpush1.msra.mxu0 0.0
    %1233 = vmatprep.subr.mxu0 0.0
    %1234 = vmatpush1.msra.mxu0 0.0
    %1235 = vmatprep.subr.mxu0 0.0
    %1236 = vmatpush1.msra.mxu0 0.0
    %1237 = vmatprep.subr.mxu0 0.0
    %1238 = vmatpush1.msra.mxu0 0.0
    %1239 = vmatprep.subr.mxu0 0.0
    %1240 = vmatpush1.msra.mxu0 0.0
    %1241 = vmatprep.mubr.f32.mxu0 0.0
    %1242 = vmatmul.mubr.f32.gmra.mrb[0].mxu0 %v551
    %v1243 = vpop.f32.mrb[0].mxu0
    %v1244 = vadd.f32 0.0, %v1243
    %v1245 = vpop.f32.mrb[0].mxu0
    %1246 = vdwg.mxu0
    %vm1247 = vcmp.eq.s32.totalorder %v945, 3
    %1249 = vset.pattern.permute.xlu0 0
    %1250 = vperm.xlu0 %1249, %v1244
    %v1251 = vpop.permute.xlu0 %1250
    %v1253 = vsel %vm1247, %v1251, %v1176
    %1254 = vmatprep.subr.mxu0 0.0
    %1255 = vmatpush1.msra.mxu0 %v58
    %1256 = vmatprep.subr.mxu0 0.0
    %1257 = vmatpush1.msra.mxu0 %v59
    %1258 = vmatprep.subr.mxu0 0.0
    %1259 = vmatpush1.msra.mxu0 %v60
    %1260 = vmatprep.subr.mxu0 0.0
    %1261 = vmatpush1.msra.mxu0 %v61
    %1262 = vmatprep.subr.mxu0 0.0
    %1263 = vmatpush1.msra.mxu0 0.0
    %1264 = vmatprep.subr.mxu0 0.0
    %1265 = vmatpush1.msra.mxu0 0.0
    %1266 = vmatprep.subr.mxu0 0.0
    %1267 = vmatpush1.msra.mxu0 0.0
    %1268 = vmatprep.subr.mxu0 0.0
    %1269 = vmatpush1.msra.mxu0 0.0
    %1270 = vmatprep.subr.mxu0 0.0
    %1271 = vmatpush1.msra.mxu0 0.0
    %1272 = vmatprep.subr.mxu0 0.0
    %1273 = vmatpush1.msra.mxu0 0.0
    %1274 = vmatprep.subr.mxu0 0.0
    %1275 = vmatpush1.msra.mxu0 0.0
    %1276 = vmatprep.subr.mxu0 0.0
    %1277 = vmatpush1.msra.mxu0 0.0
    %1278 = vmatprep.subr.mxu0 0.0
    %1279 = vmatpush1.msra.mxu0 0.0
    %1280 = vmatprep.subr.mxu0 0.0
    %1281 = vmatpush1.msra.mxu0 0.0
    %1282 = vmatprep.subr.mxu0 0.0
    %1283 = vmatpush1.msra.mxu0 0.0
    %1284 = vmatprep.subr.mxu0 0.0
    %1285 = vmatpush1.msra.mxu0 0.0
    %1286 = vmatprep.subr.mxu0 0.0
    %1287 = vmatpush1.msra.mxu0 0.0
    %1288 = vmatprep.subr.mxu0 0.0
    %1289 = vmatpush1.msra.mxu0 0.0
    %1290 = vmatprep.subr.mxu0 0.0
    %1291 = vmatpush1.msra.mxu0 0.0
    %1292 = vmatprep.subr.mxu0 0.0
    %1293 = vmatpush1.msra.mxu0 0.0
    %1294 = vmatprep.subr.mxu0 0.0
    %1295 = vmatpush1.msra.mxu0 0.0
    %1296 = vmatprep.subr.mxu0 0.0
    %1297 = vmatpush1.msra.mxu0 0.0
    %1298 = vmatprep.subr.mxu0 0.0
    %1299 = vmatpush1.msra.mxu0 0.0
    %1300 = vmatprep.subr.mxu0 0.0
    %1301 = vmatpush1.msra.mxu0 0.0
    %1302 = vmatprep.subr.mxu0 0.0
    %1303 = vmatpush1.msra.mxu0 0.0
    %1304 = vmatprep.subr.mxu0 0.0
    %1305 = vmatpush1.msra.mxu0 0.0
    %1306 = vmatprep.subr.mxu0 0.0
    %1307 = vmatpush1.msra.mxu0 0.0
    %1308 = vmatprep.subr.mxu0 0.0
    %1309 = vmatpush1.msra.mxu0 0.0
    %1310 = vmatprep.subr.mxu0 0.0
    %1311 = vmatpush1.msra.mxu0 0.0
    %1312 = vmatprep.subr.mxu0 0.0
    %1313 = vmatpush1.msra.mxu0 0.0
    %1314 = vmatprep.subr.mxu0 0.0
    %1315 = vmatpush1.msra.mxu0 0.0
    %1316 = vmatprep.subr.mxu0 0.0
    %1317 = vmatpush1.msra.mxu0 0.0
    %1318 = vmatprep.mubr.f32.mxu0 0.0
    %1319 = vmatmul.mubr.f32.gmra.mrb[0].mxu0 %v650
    %v1320 = vpop.f32.mrb[0].mxu0
    %v1321 = vadd.f32 0.0, %v1320
    %v1322 = vpop.f32.mrb[0].mxu0
    %1323 = vdwg.mxu0
    %vm1324 = vcmp.eq.s32.totalorder %v945, 4
    %1326 = vset.pattern.permute.xlu0 0
    %1327 = vperm.xlu0 %1326, %v1321
    %v1328 = vpop.permute.xlu0 %1327
    %v1330 = vsel %vm1324, %v1328, %v1253
    %1331 = vmatprep.subr.mxu0 0.0
    %1332 = vmatpush1.msra.mxu0 %v58
    %1333 = vmatprep.subr.mxu0 0.0
    %1334 = vmatpush1.msra.mxu0 %v59
    %1335 = vmatprep.subr.mxu0 0.0
    %1336 = vmatpush1.msra.mxu0 %v60
    %1337 = vmatprep.subr.mxu0 0.0
    %1338 = vmatpush1.msra.mxu0 %v61
    %1339 = vmatprep.subr.mxu0 0.0
    %1340 = vmatpush1.msra.mxu0 0.0
    %1341 = vmatprep.subr.mxu0 0.0
    %1342 = vmatpush1.msra.mxu0 0.0
    %1343 = vmatprep.subr.mxu0 0.0
    %1344 = vmatpush1.msra.mxu0 0.0
    %1345 = vmatprep.subr.mxu0 0.0
    %1346 = vmatpush1.msra.mxu0 0.0
    %1347 = vmatprep.subr.mxu0 0.0
    %1348 = vmatpush1.msra.mxu0 0.0
    %1349 = vmatprep.subr.mxu0 0.0
    %1350 = vmatpush1.msra.mxu0 0.0
    %1351 = vmatprep.subr.mxu0 0.0
    %1352 = vmatpush1.msra.mxu0 0.0
    %1353 = vmatprep.subr.mxu0 0.0
    %1354 = vmatpush1.msra.mxu0 0.0
    %1355 = vmatprep.subr.mxu0 0.0
    %1356 = vmatpush1.msra.mxu0 0.0
    %1357 = vmatprep.subr.mxu0 0.0
    %1358 = vmatpush1.msra.mxu0 0.0
    %1359 = vmatprep.subr.mxu0 0.0
    %1360 = vmatpush1.msra.mxu0 0.0
    %1361 = vmatprep.subr.mxu0 0.0
    %1362 = vmatpush1.msra.mxu0 0.0
    %1363 = vmatprep.subr.mxu0 0.0
    %1364 = vmatpush1.msra.mxu0 0.0
    %1365 = vmatprep.subr.mxu0 0.0
    %1366 = vmatpush1.msra.mxu0 0.0
    %1367 = vmatprep.subr.mxu0 0.0
    %1368 = vmatpush1.msra.mxu0 0.0
    %1369 = vmatprep.subr.mxu0 0.0
    %1370 = vmatpush1.msra.mxu0 0.0
    %1371 = vmatprep.subr.mxu0 0.0
    %1372 = vmatpush1.msra.mxu0 0.0
    %1373 = vmatprep.subr.mxu0 0.0
    %1374 = vmatpush1.msra.mxu0 0.0
    %1375 = vmatprep.subr.mxu0 0.0
    %1376 = vmatpush1.msra.mxu0 0.0
    %1377 = vmatprep.subr.mxu0 0.0
    %1378 = vmatpush1.msra.mxu0 0.0
    %1379 = vmatprep.subr.mxu0 0.0
    %1380 = vmatpush1.msra.mxu0 0.0
    %1381 = vmatprep.subr.mxu0 0.0
    %1382 = vmatpush1.msra.mxu0 0.0
    %1383 = vmatprep.subr.mxu0 0.0
    %1384 = vmatpush1.msra.mxu0 0.0
    %1385 = vmatprep.subr.mxu0 0.0
    %1386 = vmatpush1.msra.mxu0 0.0
    %1387 = vmatprep.subr.mxu0 0.0
    %1388 = vmatpush1.msra.mxu0 0.0
    %1389 = vmatprep.subr.mxu0 0.0
    %1390 = vmatpush1.msra.mxu0 0.0
    %1391 = vmatprep.subr.mxu0 0.0
    %1392 = vmatpush1.msra.mxu0 0.0
    %1393 = vmatprep.subr.mxu0 0.0
    %1394 = vmatpush1.msra.mxu0 0.0
    %1395 = vmatprep.mubr.f32.mxu0 0.0
    %1396 = vmatmul.mubr.f32.gmra.mrb[0].mxu0 %v749
    %v1397 = vpop.f32.mrb[0].mxu0
    %v1398 = vadd.f32 0.0, %v1397
    %v1399 = vpop.f32.mrb[0].mxu0
    %1400 = vdwg.mxu0
    %vm1401 = vcmp.eq.s32.totalorder %v945, 5
    %1403 = vset.pattern.permute.xlu0 0
    %1404 = vperm.xlu0 %1403, %v1398
    %v1405 = vpop.permute.xlu0 %1404
    %v1407 = vsel %vm1401, %v1405, %v1330
    %1408 = vmatprep.subr.mxu0 0.0
    %1409 = vmatpush1.msra.mxu0 %v58
    %1410 = vmatprep.subr.mxu0 0.0
    %1411 = vmatpush1.msra.mxu0 %v59
    %1412 = vmatprep.subr.mxu0 0.0
    %1413 = vmatpush1.msra.mxu0 %v60
    %1414 = vmatprep.subr.mxu0 0.0
    %1415 = vmatpush1.msra.mxu0 %v61
    %1416 = vmatprep.subr.mxu0 0.0
    %1417 = vmatpush1.msra.mxu0 0.0
    %1418 = vmatprep.subr.mxu0 0.0
    %1419 = vmatpush1.msra.mxu0 0.0
    %1420 = vmatprep.subr.mxu0 0.0
    %1421 = vmatpush1.msra.mxu0 0.0
    %1422 = vmatprep.subr.mxu0 0.0
    %1423 = vmatpush1.msra.mxu0 0.0
    %1424 = vmatprep.subr.mxu0 0.0
    %1425 = vmatpush1.msra.mxu0 0.0
    %1426 = vmatprep.subr.mxu0 0.0
    %1427 = vmatpush1.msra.mxu0 0.0
    %1428 = vmatprep.subr.mxu0 0.0
    %1429 = vmatpush1.msra.mxu0 0.0
    %1430 = vmatprep.subr.mxu0 0.0
    %1431 = vmatpush1.msra.mxu0 0.0
    %1432 = vmatprep.subr.mxu0 0.0
    %1433 = vmatpush1.msra.mxu0 0.0
    %1434 = vmatprep.subr.mxu0 0.0
    %1435 = vmatpush1.msra.mxu0 0.0
    %1436 = vmatprep.subr.mxu0 0.0
    %1437 = vmatpush1.msra.mxu0 0.0
    %1438 = vmatprep.subr.mxu0 0.0
    %1439 = vmatpush1.msra.mxu0 0.0
    %1440 = vmatprep.subr.mxu0 0.0
    %1441 = vmatpush1.msra.mxu0 0.0
    %1442 = vmatprep.subr.mxu0 0.0
    %1443 = vmatpush1.msra.mxu0 0.0
    %1444 = vmatprep.subr.mxu0 0.0
    %1445 = vmatpush1.msra.mxu0 0.0
    %1446 = vmatprep.subr.mxu0 0.0
    %1447 = vmatpush1.msra.mxu0 0.0
    %1448 = vmatprep.subr.mxu0 0.0
    %1449 = vmatpush1.msra.mxu0 0.0
    %1450 = vmatprep.subr.mxu0 0.0
    %1451 = vmatpush1.msra.mxu0 0.0
    %1452 = vmatprep.subr.mxu0 0.0
    %1453 = vmatpush1.msra.mxu0 0.0
    %1454 = vmatprep.subr.mxu0 0.0
    %1455 = vmatpush1.msra.mxu0 0.0
    %1456 = vmatprep.subr.mxu0 0.0
    %1457 = vmatpush1.msra.mxu0 0.0
    %1458 = vmatprep.subr.mxu0 0.0
    %1459 = vmatpush1.msra.mxu0 0.0
    %1460 = vmatprep.subr.mxu0 0.0
    %1461 = vmatpush1.msra.mxu0 0.0
    %1462 = vmatprep.subr.mxu0 0.0
    %1463 = vmatpush1.msra.mxu0 0.0
    %1464 = vmatprep.subr.mxu0 0.0
    %1465 = vmatpush1.msra.mxu0 0.0
    %1466 = vmatprep.subr.mxu0 0.0
    %1467 = vmatpush1.msra.mxu0 0.0
    %1468 = vmatprep.subr.mxu0 0.0
    %1469 = vmatpush1.msra.mxu0 0.0
    %1470 = vmatprep.subr.mxu0 0.0
    %1471 = vmatpush1.msra.mxu0 0.0
    %1472 = vmatprep.mubr.f32.mxu0 0.0
    %1473 = vmatmul.mubr.f32.gmra.mrb[0].mxu0 %v848
    %v1474 = vpop.f32.mrb[0].mxu0
    %v1475 = vadd.f32 0.0, %v1474
    %v1476 = vpop.f32.mrb[0].mxu0
    %1477 = vdwg.mxu0
    %vm1478 = vcmp.eq.s32.totalorder %v945, 6
    %1480 = vset.pattern.permute.xlu0 0
    %1481 = vperm.xlu0 %1480, %v1475
    %v1482 = vpop.permute.xlu0 %1481
    %v1484 = vsel %vm1478, %v1482, %v1407
    %1486 = vrot.lane.b32.xlu0 %v943, 64
    %v1487 = vpop.permute.xlu0 %1486
    %v1488 = vsel %vm153, %v1487, 0
    %1490 = vmatprep.subr.mxu0 0.0
    %1491 = vmatpush1.msra.mxu0 %v58
    %1492 = vmatprep.subr.mxu0 0.0
    %1493 = vmatpush1.msra.mxu0 %v59
    %1494 = vmatprep.subr.mxu0 0.0
    %1495 = vmatpush1.msra.mxu0 %v60
    %1496 = vmatprep.subr.mxu0 0.0
    %1497 = vmatpush1.msra.mxu0 %v61
    %1498 = vmatprep.subr.mxu0 0.0
    %1499 = vmatpush1.msra.mxu0 0.0
    %1500 = vmatprep.subr.mxu0 0.0
    %1501 = vmatpush1.msra.mxu0 0.0
    %1502 = vmatprep.subr.mxu0 0.0
    %1503 = vmatpush1.msra.mxu0 0.0
    %1504 = vmatprep.subr.mxu0 0.0
    %1505 = vmatpush1.msra.mxu0 0.0
    %1506 = vmatprep.subr.mxu0 0.0
    %1507 = vmatpush1.msra.mxu0 0.0
    %1508 = vmatprep.subr.mxu0 0.0
    %1509 = vmatpush1.msra.mxu0 0.0
    %1510 = vmatprep.subr.mxu0 0.0
    %1511 = vmatpush1.msra.mxu0 0.0
    %1512 = vmatprep.subr.mxu0 0.0
    %1513 = vmatpush1.msra.mxu0 0.0
    %1514 = vmatprep.subr.mxu0 0.0
    %1515 = vmatpush1.msra.mxu0 0.0
    %1516 = vmatprep.subr.mxu0 0.0
    %1517 = vmatpush1.msra.mxu0 0.0
    %1518 = vmatprep.subr.mxu0 0.0
    %1519 = vmatpush1.msra.mxu0 0.0
    %1520 = vmatprep.subr.mxu0 0.0
    %1521 = vmatpush1.msra.mxu0 0.0
    %1522 = vmatprep.subr.mxu0 0.0
    %1523 = vmatpush1.msra.mxu0 0.0
    %1524 = vmatprep.subr.mxu0 0.0
    %1525 = vmatpush1.msra.mxu0 0.0
    %1526 = vmatprep.subr.mxu0 0.0
    %1527 = vmatpush1.msra.mxu0 0.0
    %1528 = vmatprep.subr.mxu0 0.0
    %1529 = vmatpush1.msra.mxu0 0.0
    %1530 = vmatprep.subr.mxu0 0.0
    %1531 = vmatpush1.msra.mxu0 0.0
    %1532 = vmatprep.subr.mxu0 0.0
    %1533 = vmatpush1.msra.mxu0 0.0
    %1534 = vmatprep.subr.mxu0 0.0
    %1535 = vmatpush1.msra.mxu0 0.0
    %1536 = vmatprep.subr.mxu0 0.0
    %1537 = vmatpush1.msra.mxu0 0.0
    %1538 = vmatprep.subr.mxu0 0.0
    %1539 = vmatpush1.msra.mxu0 0.0
    %1540 = vmatprep.subr.mxu0 0.0
    %1541 = vmatpush1.msra.mxu0 0.0
    %1542 = vmatprep.subr.mxu0 0.0
    %1543 = vmatpush1.msra.mxu0 0.0
    %1544 = vmatprep.subr.mxu0 0.0
    %1545 = vmatpush1.msra.mxu0 0.0
    %1546 = vmatprep.subr.mxu0 0.0
    %1547 = vmatpush1.msra.mxu0 0.0
    %1548 = vmatprep.subr.mxu0 0.0
    %1549 = vmatpush1.msra.mxu0 0.0
    %1550 = vmatprep.subr.mxu0 0.0
    %1551 = vmatpush1.msra.mxu0 0.0
    %1552 = vmatprep.subr.mxu0 0.0
    %1553 = vmatpush1.msra.mxu0 0.0
    %1554 = vmatprep.mubr.f32.mxu0 0.0
    %1555 = vmatmul.mubr.f32.gmra.mrb[0].mxu0 %v1488
    %v1556 = vpop.f32.mrb[0].mxu0
    %v1557 = vadd.f32 0.0, %v1556
    %v1558 = vpop.f32.mrb[0].mxu0
    %1559 = vdwg.mxu0
    %vm1560 = vcmp.eq.s32.totalorder %v945, 7
    %1562 = vset.pattern.permute.xlu0 0
    %1563 = vperm.xlu0 %1562, %v1557
    %v1564 = vpop.permute.xlu0 %1563
    %v1566 = vsel %vm1560, %v1564, %v1484
    %v1568 = vlaneseq
    %v1569 = vshrl.u32 %v1568, 7
    %v1570 = vsub.s32 0, %v1569
    %v1571 = vrot.slane %v62, %v1570
    %1572 = vset.pattern.permute.xlu0 0
    %1573 = vperm.xlu0 %1572, %v1571
    %v1574 = vpop.permute.xlu0 %1573
    %v1576 = vadd.f32 %v1566, %v1574
    %vm1577 = vcmask 58368
    %1578 = vst.msk [vmem:[#allocation8] sm:$0x3] %vm1577, %v1576
    // Predicated region
    $region38: #{tpu_custom_call.1} parent=1 // pred_check
      _
    $region39: #{tpu_custom_call.1} parent=1 // pred_check_branch
      %1580 = sbr.rel (0) target = $region41
    $region40: #{tpu_custom_call.1} parent=1 // pred_region
      %s1582 = ssub.s32 32, 32
      %1583 = vsyncadd [#allocation5], %s1582
      %s1585 = sshll.u32 [#allocation8], 4
      %s1586 = int_to_ptr.vmem [resolvable:$true] %s1585
      %1588 = dma.vmem_to_hbm [thread:$0]  %s1586, 32, %s7, [#allocation5]
    $region41: #{tpu_custom_call.1} parent=1 // pred_fallthru
      _
    // Predicated region
    $region42: #{tpu_custom_call.1} parent=1 // pred_check
      _
    $region43: #{tpu_custom_call.1} parent=1 // pred_check_branch
      %1590 = sbr.rel (0) target = $region45
    $region44: #{tpu_custom_call.1} parent=1 // pred_region
      %1591 = dma.done [#allocation5], 32
    $region45: #{tpu_custom_call.1} parent=1 // pred_fallthru
      _
    %1592 = vsyncpa [#allocation4], 1
    %1593 = vsyncpa [#allocation7], 1
    %1594 = vsyncpa [#allocation5], 1

</llo_original>
